<compile_context>
chip_gen: v7x
topology: tpu7x:2x2x1
jax: 0.10.0
libtpu: 0.0.40
codegen_flags: <defaults>
</compile_context>

<pallas_src>
import functools

import jax
import jax.numpy as jnp
from jax import lax
from jax.experimental import pallas as pl
from jax.experimental.pallas import tpu as pltpu


def _round_up(x, m):
    return ((x + m - 1) // m) * m


# ---------------------------------------------------------------------------
# Pallas kernel: t_blk timesteps of the masked bi-LSTM recurrence, both
# directions interleaved per step.  Grid = (time_block,), sequential carry in
# VMEM scratch (h/c per direction).
# ---------------------------------------------------------------------------
def _bilstm_block_kernel(len_ref, gxf_ref, gxb_ref, whh_ref,
                         outf_ref, outb_ref,
                         hf_ref, cf_ref, hb_ref, cb_ref,
                         *, t_blk, t_total, unroll):
    tb = pl.program_id(0)

    @pl.when(tb == 0)
    def _():
        hf_ref[...] = jnp.zeros_like(hf_ref)
        cf_ref[...] = jnp.zeros_like(cf_ref)
        hb_ref[...] = jnp.zeros_like(hb_ref)
        cb_ref[...] = jnp.zeros_like(cb_ref)

    hp = hf_ref.shape[-1]
    lens = len_ref[...]                                  # (Bp, 1) f32, tiny, resident
    t_base = (tb * t_blk).astype(jnp.float32)

    def lstm_update(gates, h_prev, c_prev, valid):
        # Gate layout prepared outside: [ i | f | o | g ], each hp lanes wide,
        # so one sigmoid covers (i, f, o) and one tanh covers g.
        sig = jax.nn.sigmoid(gates[:, : 3 * hp])
        i_g = sig[:, 0 * hp:1 * hp]
        f_g = sig[:, 1 * hp:2 * hp]
        o_g = sig[:, 2 * hp:3 * hp]
        g_g = jnp.tanh(gates[:, 3 * hp:])
        c_cand = f_g * c_prev + i_g * g_g
        h_cand = o_g * jnp.tanh(c_cand)
        c_new = jnp.where(valid, c_cand, c_prev)         # freeze through padding
        h_new = jnp.where(valid, h_cand, h_prev)
        return h_new, c_new

    def one_step(s):
        # Both directions walk their gx block forward; the bwd half was
        # time-reversed in the XLA prologue, so its natural time is T-1-t_lin.
        t_lin = t_base + s.astype(jnp.float32)
        valid_f = lens > t_lin                           # (Bp, 1) bool
        valid_b = lens > (float(t_total - 1) - t_lin)

        h_f = hf_ref[...]
        c_f = cf_ref[...]
        h_b = hb_ref[...]
        c_b = cb_ref[...]

        # Two independent (Bp,Hp)@(Hp,4Hp) matmuls + gate chains per step;
        # the LLO scheduler interleaves them to hide MXU/EUP latency.
        gates_f = gxf_ref[s].astype(jnp.float32) + jnp.dot(
            h_f.astype(jnp.bfloat16), whh_ref[0],
            preferred_element_type=jnp.float32)
        gates_b = gxb_ref[s].astype(jnp.float32) + jnp.dot(
            h_b.astype(jnp.bfloat16), whh_ref[1],
            preferred_element_type=jnp.float32)

        h_f_new, c_f_new = lstm_update(gates_f, h_f, c_f, valid_f)
        h_b_new, c_b_new = lstm_update(gates_b, h_b, c_b, valid_b)

        hf_ref[...] = h_f_new
        cf_ref[...] = c_f_new
        hb_ref[...] = h_b_new
        cb_ref[...] = c_b_new
        # Exact zeros at padded positions (pad_packed_sequence semantics).
        outf_ref[s] = jnp.where(valid_f, h_f_new, 0.0)
        outb_ref[s] = jnp.where(valid_b, h_b_new, 0.0)

    def body(su, carry):
        for uu in range(unroll):                         # small bounded unroll
            one_step(su * unroll + uu)
        return carry

    lax.fori_loop(0, t_blk // unroll, body, 0)


def _bilstm_block_scan(lengths_col, gx_f, gx_b, whh, *, t_blk, vmem_limit):
    """lengths_col: (Bp, 1) f32; gx_f/gx_b: (T_pad, Bp, 4*Hp) bf16 (bwd half
    already time-reversed); whh: (2, Hp, 4*Hp) bf16.
    Returns (out_f, out_b), each (T_pad, Bp, Hp) f32 (out_b in reversed time)."""
    t_pad, bp, g4 = gx_f.shape
    hp = g4 // 4
    n_t = t_pad // t_blk
    unroll = 2 if t_blk % 2 == 0 else 1

    flops = int(2 * t_pad * 2 * bp * hp * 4 * hp)            # 2 dirs, per-step matmul
    trans = int(2 * t_pad * bp * 5 * hp)                      # sigmoid/tanh per gate
    bytes_accessed = int((gx_f.size + gx_b.size) * 2          # bf16 gx stream
                         + 2 * t_pad * bp * hp * 4            # f32 outputs
                         + whh.size * 2 + lengths_col.size * 4)

    grid_spec = pltpu.PrefetchScalarGridSpec(
        num_scalar_prefetch=0,
        grid=(n_t,),
        in_specs=[
            pl.BlockSpec((bp, 1), lambda t: (0, 0)),                  # lengths
            pl.BlockSpec((t_blk, bp, 4 * hp), lambda t: (t, 0, 0)),   # gx fwd
            pl.BlockSpec((t_blk, bp, 4 * hp), lambda t: (t, 0, 0)),   # gx bwd (rev)
            pl.BlockSpec((2, hp, 4 * hp), lambda t: (0, 0, 0)),       # W_hh both dirs
        ],
        out_specs=[
            pl.BlockSpec((t_blk, bp, hp), lambda t: (t, 0, 0)),
            pl.BlockSpec((t_blk, bp, hp), lambda t: (t, 0, 0)),
        ],
        scratch_shapes=[
            pltpu.VMEM((bp, hp), jnp.float32),   # h fwd
            pltpu.VMEM((bp, hp), jnp.float32),   # c fwd
            pltpu.VMEM((bp, hp), jnp.float32),   # h bwd
            pltpu.VMEM((bp, hp), jnp.float32),   # c bwd
        ],
    )

    out_f, out_b = pl.pallas_call(
        functools.partial(_bilstm_block_kernel, t_blk=t_blk, t_total=t_pad,
                          unroll=unroll),
        out_shape=(jax.ShapeDtypeStruct((t_pad, bp, hp), jnp.float32),
                   jax.ShapeDtypeStruct((t_pad, bp, hp), jnp.float32)),
        grid_spec=grid_spec,
        compiler_params=pltpu.CompilerParams(
            dimension_semantics=("arbitrary",),   # time is a serial carry axis
            vmem_limit_bytes=vmem_limit),
        cost_estimate=pl.CostEstimate(flops=flops, transcendentals=trans,
                                      bytes_accessed=bytes_accessed),
    )(lengths_col, gx_f, gx_b, whh)
    return out_f, out_b


# ---------------------------------------------------------------------------
# VMEM budgeting: pick t_blk from an explicit working-set formula.
# ---------------------------------------------------------------------------
def _vmem_working_set(t_blk, bp, hp):
    fixed = 2 * 2 * hp * 4 * hp * 2          # W_hh (2, Hp, 4Hp) bf16, double-buffered
    fixed += 4 * bp * hp * 4                 # h/c scratch, both directions (f32)
    fixed += 2 * bp * 128 * 4                # lengths column (lane-padded), dbl-buf
    per_t = 2 * 2 * bp * (4 * hp * 2 + hp * 4)   # dirs * dbl-buf * (bf16 gx + f32 out)
    return fixed + per_t * t_blk, fixed, per_t


def _choose_t_blk(seq_len, bp, hp, budget_bytes):
    _, fixed, per_t = _vmem_working_set(1, bp, hp)
    t = max(1, (budget_bytes - fixed) // per_t)
    t = int(min(t, 64, seq_len))
    if t >= 2:
        t -= t % 2                           # even, for the 2-way inner unroll
    return max(t, 1)


# ---------------------------------------------------------------------------
# Parameters: raw nn.LSTM-style init + packing into the padded kernel layout.
# ---------------------------------------------------------------------------
def init_encode_layer_params(key, in_size, hidden_size, num_layers=2, bi=True):
    """Raw params mirroring nn.LSTM: params[layer][dir] =
    dict(w_ih (4H, In_l), w_hh (4H, H), b_ih (4H,), b_hh (4H,)); gates i,f,g,o."""
    assert bi, "EncodeLayer default (bidirectional) is what is implemented"
    bound = 1.0 / jnp.sqrt(hidden_size)
    params = []
    for layer in range(num_layers):
        layer_in = in_size if layer == 0 else 2 * hidden_size
        dirs = []
        for _ in range(2):
            key, k1, k2, k3, k4 = jax.random.split(key, 5)
            dirs.append(dict(
                w_ih=jax.random.uniform(k1, (4 * hidden_size, layer_in),
                                        minval=-bound, maxval=bound,
                                        dtype=jnp.float32),
                w_hh=jax.random.uniform(k2, (4 * hidden_size, hidden_size),
                                        minval=-bound, maxval=bound,
                                        dtype=jnp.float32),
                b_ih=jax.random.uniform(k3, (4 * hidden_size,),
                                        minval=-bound, maxval=bound,
                                        dtype=jnp.float32),
                b_hh=jax.random.uniform(k4, (4 * hidden_size,),
                                        minval=-bound, maxval=bound,
                                        dtype=jnp.float32),
            ))
        params.append(dirs)
    return params


_GATE_ORDER = (0, 1, 3, 2)    # torch (i, f, g, o) -> kernel layout (i, f, o, g)


def _pack_gate_cols(w, h, hp):
    """Reorder trailing 4*h gate axis to (i,f,o,g), pad each gate to hp lanes."""
    pad = [(0, 0)] * (w.ndim - 1) + [(0, hp - h)]
    parts = []
    for g in _GATE_ORDER:
        blk = w[..., g * h:(g + 1) * h]
        if hp != h:
            blk = jnp.pad(blk, pad)
        parts.append(blk)
    return jnp.concatenate(parts, axis=-1)


def _expand_bidir_rows(w, h, hp):
    """(2*h, C) -> (2*hp, C): fwd rows at [0:h], bwd rows at [hp:hp+h]."""
    out = jnp.zeros((2 * hp, w.shape[-1]), w.dtype)
    out = out.at[:h].set(w[:h])
    out = out.at[hp:hp + h].set(w[h:])
    return out


def prepare_encode_params(raw_params, hidden_size):
    """Pad / transpose / stack raw LSTM params into the kernel layout."""
    h = hidden_size
    hp = _round_up(h, 128)
    layers = []
    for layer_idx, dirs in enumerate(raw_params):
        wih_l, whh_l, b_l = [], [], []
        for p in dirs:
            wih_t = _pack_gate_cols(p["w_ih"].T, h, hp)            # (In_l, 4*hp)
            if layer_idx > 0:
                wih_t = _expand_bidir_rows(wih_t, h, hp)           # (2*hp, 4*hp)
            whh_t = _pack_gate_cols(p["w_hh"].T, h, hp)            # (h, 4*hp)
            whh_t = jnp.pad(whh_t, ((0, hp - h), (0, 0)))          # (hp, 4*hp)
            bias = _pack_gate_cols(p["b_ih"] + p["b_hh"], h, hp)   # (4*hp,)
            wih_l.append(wih_t)
            whh_l.append(whh_t)
            b_l.append(bias)
        layers.append(dict(
            wih=jnp.stack(wih_l, 0).astype(jnp.bfloat16),          # (2, In_l, 4*hp)
            whh=jnp.stack(whh_l, 0).astype(jnp.bfloat16),          # (2, hp, 4*hp)
            b=jnp.stack(b_l, 0).astype(jnp.float32),               # (2, 4*hp)
        ))
    return dict(layers=layers, hidden=h, hidden_pad=hp)


# ---------------------------------------------------------------------------
# EncodeLayer forward.
# ---------------------------------------------------------------------------
def encode_layer_forward(x, mask, prepared, *, vmem_budget_bytes=40 << 20):
    """x: (B, S, in_size), mask: (B, S) in {0,1} (contiguous valid prefix).
    Returns (B, S, 2*hidden) f32 with exact zeros at padded timesteps, matching
    pack_padded_sequence -> bi-LSTM -> pad_packed_sequence (+ zero-pad to S)."""
    b, s, _ = x.shape
    h = prepared["hidden"]
    hp = prepared["hidden_pad"]

    b_pad = _round_up(b, 16)          # bf16 MXU LHS packs 16 rows per vreg
    t_blk = _choose_t_blk(s, b_pad, hp, vmem_budget_bytes)
    t_pad = _round_up(s, t_blk)

    total_vmem, _, _ = _vmem_working_set(t_blk, b_pad, hp)
    vmem_limit = int(min(max(2 * total_vmem, 16 << 20), 64 << 20))

    # Per-row lengths replace the per-timestep mask DMA stream (the torch
    # module only uses sum(mask) anyway, via pack_padded_sequence).
    lengths = jnp.sum(mask.astype(jnp.float32), axis=-1)              # (B,)
    lengths_col = jnp.pad(lengths, (0, b_pad - b))[:, None]           # (Bp, 1)

    # Time-major, padded activations.
    xt = jnp.transpose(x.astype(jnp.float32), (1, 0, 2))
    xt = jnp.pad(xt, ((0, t_pad - s), (0, b_pad - b), (0, 0)))

    layer_in = xt
    for lp in prepared["layers"]:
        # Hoisted input projection for all timesteps & both directions:
        # bf16 operands, f32 MXU accumulation, f32 bias add, bf16 storage.
        gx = jnp.einsum("tbi,dig->dtbg", layer_in.astype(jnp.bfloat16),
                        lp["wih"], preferred_element_type=jnp.float32)
        gx = gx + lp["b"][:, None, None, :]
        gx_f = gx[0].astype(jnp.bfloat16)
        gx_b = gx[1, ::-1].astype(jnp.bfloat16)        # bwd walks reversed time
        out_f, out_b = _bilstm_block_scan(lengths_col, gx_f, gx_b, lp["whh"],
                                          t_blk=t_blk, vmem_limit=vmem_limit)
        layer_in = jnp.concatenate([out_f, out_b[::-1]], axis=-1)     # (T_pad,Bp,2*Hp)

    fwd = layer_in[:s, :b, :h]
    bwd = layer_in[:s, :b, hp:hp + h]
    out = jnp.concatenate([fwd, bwd], axis=-1)                        # (S, B, 2*h)
    return jnp.transpose(out, (1, 0, 2))                              # (B, S, 2*h)


# ---------------------------------------------------------------------------
# Pure-JAX reference (lax.scan) mirroring the kernel's bf16 numerics.
# ---------------------------------------------------------------------------
def _ref_masked_lstm(x_tbi, mask_tb1, p):
    h_size = p["w_hh"].shape[1]
    b = x_tbi.shape[1]
    wih_t = p["w_ih"].T.astype(jnp.bfloat16)
    whh_t = p["w_hh"].T.astype(jnp.bfloat16)
    bias = (p["b_ih"] + p["b_hh"]).astype(jnp.float32)

    gx = jnp.einsum("tbi,ig->tbg", x_tbi.astype(jnp.bfloat16), wih_t,
                    preferred_element_type=jnp.float32) + bias
    gx = gx.astype(jnp.bfloat16).astype(jnp.float32)   # kernel stores gx in bf16

    def step(carry, inp):
        hh, cc = carry
        g, m = inp
        gates = g + jnp.dot(hh.astype(jnp.bfloat16), whh_t,
                            preferred_element_type=jnp.float32)
        i_g = jax.nn.sigmoid(gates[:, 0 * h_size:1 * h_size])
        f_g = jax.nn.sigmoid(gates[:, 1 * h_size:2 * h_size])
        g_g = jnp.tanh(gates[:, 2 * h_size:3 * h_size])
        o_g = jax.nn.sigmoid(gates[:, 3 * h_size:4 * h_size])
        c_cand = f_g * cc + i_g * g_g
        h_cand = o_g * jnp.tanh(c_cand)
        c_new = jnp.where(m > 0, c_cand, cc)
        h_new = jnp.where(m > 0, h_cand, hh)
        return (h_new, c_new), h_new * m

    init = (jnp.zeros((b, h_size), jnp.float32),
            jnp.zeros((b, h_size), jnp.float32))
    _, out = lax.scan(step, init, (gx, mask_tb1))
    return out


def _ref_encode_layer(x, mask, raw_params):
    xt = jnp.transpose(x.astype(jnp.float32), (1, 0, 2))
    mt = jnp.transpose(mask.astype(jnp.float32), (1, 0))[:, :, None]
    layer_in = xt
    for dirs in raw_params:
        outs = []
        for d_idx, p in enumerate(dirs):
            if d_idx == 0:
                o = _ref_masked_lstm(layer_in, mt, p)
            else:
                o = _ref_masked_lstm(layer_in[::-1], mt[::-1], p)[::-1]
            outs.append(o)
        layer_in = jnp.concatenate(outs, axis=-1)
    return jnp.transpose(layer_in, (1, 0, 2))


if __name__ == "__main__":
    key = jax.random.PRNGKey(0)
    batch, seq, in_size, hidden = 2, 8, 16, 32

    k_x, k_p = jax.random.split(key)
    x = jax.random.normal(k_x, (batch, seq, in_size), dtype=jnp.float32)

    # Variable-length sequences with contiguous valid prefixes (lengths 8, 5).
    lengths = jnp.array([8, 5], dtype=jnp.int32)
    mask = (jnp.arange(seq)[None, :] < lengths[:, None]).astype(jnp.float32)

    raw = init_encode_layer_params(k_p, in_size, hidden, num_layers=2, bi=True)
    prepared = prepare_encode_params(raw, hidden)

    out = jax.block_until_ready(encode_layer_forward(x, mask, prepared))
    assert out.shape == (batch, seq, 2 * hidden), out.shape

    ref = jax.block_until_ready(_ref_encode_layer(x, mask, raw))
    max_err = float(jnp.max(jnp.abs(out - ref)))
    # bf16 weights / gx (f32 accumulation) is an accepted deviation from torch
    # f32 nn.LSTM numerics; reference mirrors it, tolerance covers residual
    # rounding-order differences.
    assert jnp.allclose(out, ref, atol=2.5e-2, rtol=2.5e-2), max_err
    # pad_packed_sequence semantics: padded timesteps are exactly zero.
    assert jnp.all(out[1, 5:] == 0.0)

    print("KERNEL_OK")
</pallas_src>

<mosaic_0001>
module attributes {stable_mosaic.version = 11 : i64} {
  func.func @_bilstm_block_kernel(%arg0: i32, %arg1: memref<16x1xf32, #tpu.memory_space<vmem>>, %arg2: memref<8x16x512xbf16, #tpu.memory_space<vmem>>, %arg3: memref<8x16x512xbf16, #tpu.memory_space<vmem>>, %arg4: memref<2x128x512xbf16, #tpu.memory_space<vmem>>, %arg5: memref<8x16x128xf32, #tpu.memory_space<vmem>>, %arg6: memref<8x16x128xf32, #tpu.memory_space<vmem>>, %arg7: memref<16x128xf32, #tpu.memory_space<vmem>>, %arg8: memref<16x128xf32, #tpu.memory_space<vmem>>, %arg9: memref<16x128xf32, #tpu.memory_space<vmem>>, %arg10: memref<16x128xf32, #tpu.memory_space<vmem>>) attributes {dimension_semantics = [#tpu.dimension_semantics<arbitrary>], iteration_bounds = array<i64: 1>, scalar_prefetch = 0 : i64, scratch_operands = 4 : i64, tpu.core_type = #tpu.core_type<tc>, window_params = [{pipeline_mode = #tpu.pipeline_mode<synchronous>, transform_indices = @transform_0, window_bounds = array<i64: 16, 1>}, {transform_indices = @transform_1, window_bounds = array<i64: 8, 16, 512>}, {transform_indices = @transform_2, window_bounds = array<i64: 8, 16, 512>}, {pipeline_mode = #tpu.pipeline_mode<synchronous>, transform_indices = @transform_3, window_bounds = array<i64: 2, 128, 512>}, {transform_indices = @transform_4, window_bounds = array<i64: 8, 16, 128>}, {transform_indices = @transform_5, window_bounds = array<i64: 8, 16, 128>}]} {
    %c0_i32 = arith.constant 0 : i32
    %0 = arith.cmpi eq, %arg0, %c0_i32 : i32
    %1 = arith.extui %0 : i1 to i32
    %c0_i32_0 = arith.constant 0 : i32
    %2 = arith.cmpi ne, %1, %c0_i32_0 : i32
    scf.if %2 {
      %cst = arith.constant 0.000000e+00 : f32
      %7 = vector.broadcast %cst : f32 to vector<16x128xf32>
      %c0_4 = arith.constant 0 : index
      %c0_5 = arith.constant 0 : index
      %8 = vector.load %arg7[%c0_4, %c0_5] : memref<16x128xf32, #tpu.memory_space<vmem>>, vector<16x128xf32>
      tpu.vector_store %arg7[%c0_4, %c0_5], %7 {strides = array<i32>} : memref<16x128xf32, #tpu.memory_space<vmem>>, vector<16x128xf32>,
      %cst_6 = arith.constant 0.000000e+00 : f32
      %9 = vector.broadcast %cst_6 : f32 to vector<16x128xf32>
      %c0_7 = arith.constant 0 : index
      %c0_8 = arith.constant 0 : index
      %10 = vector.load %arg8[%c0_7, %c0_8] : memref<16x128xf32, #tpu.memory_space<vmem>>, vector<16x128xf32>
      tpu.vector_store %arg8[%c0_7, %c0_8], %9 {strides = array<i32>} : memref<16x128xf32, #tpu.memory_space<vmem>>, vector<16x128xf32>,
      %cst_9 = arith.constant 0.000000e+00 : f32
      %11 = vector.broadcast %cst_9 : f32 to vector<16x128xf32>
      %c0_10 = arith.constant 0 : index
      %c0_11 = arith.constant 0 : index
      %12 = vector.load %arg9[%c0_10, %c0_11] : memref<16x128xf32, #tpu.memory_space<vmem>>, vector<16x128xf32>
      tpu.vector_store %arg9[%c0_10, %c0_11], %11 {strides = array<i32>} : memref<16x128xf32, #tpu.memory_space<vmem>>, vector<16x128xf32>,
      %cst_12 = arith.constant 0.000000e+00 : f32
      %13 = vector.broadcast %cst_12 : f32 to vector<16x128xf32>
      %c0_13 = arith.constant 0 : index
      %c0_14 = arith.constant 0 : index
      %14 = vector.load %arg10[%c0_13, %c0_14] : memref<16x128xf32, #tpu.memory_space<vmem>>, vector<16x128xf32>
      tpu.vector_store %arg10[%c0_13, %c0_14], %13 {strides = array<i32>} : memref<16x128xf32, #tpu.memory_space<vmem>>, vector<16x128xf32>,
    } else {
    }
    %c0 = arith.constant 0 : index
    %c0_1 = arith.constant 0 : index
    %3 = vector.load %arg1[%c0, %c0_1] : memref<16x1xf32, #tpu.memory_space<vmem>>, vector<16x1xf32>
    %c8_i32 = arith.constant 8 : i32
    %4 = arith.muli %arg0, %c8_i32 : i32
    %5 = arith.sitofp %4 : i32 to f32
    %c0_i32_2 = arith.constant 0 : i32
    %c4_i32 = arith.constant 4 : i32
    %6 = arith.addi %c0_i32_2, %c4_i32 : i32
    %c1_i32 = arith.constant 1 : i32
    scf.for %arg11 = %c0_i32_2 to %6 step %c1_i32  : i32 {
      %c2_i32 = arith.constant 2 : i32
      %7 = arith.muli %arg11, %c2_i32 : i32
      %c0_i32_4 = arith.constant 0 : i32
      %8 = arith.addi %7, %c0_i32_4 : i32
      %9 = arith.sitofp %8 : i32 to f32
      %10 = arith.addf %5, %9 : f32
      %11 = vector.broadcast %10 : f32 to vector<16x1xf32>
      %12 = arith.cmpf ogt, %3, %11 : vector<16x1xf32>
      %cst = arith.constant 7.000000e+00 : f32
      %13 = arith.subf %cst, %10 : f32
      %14 = vector.broadcast %13 : f32 to vector<16x1xf32>
      %15 = arith.cmpf ogt, %3, %14 : vector<16x1xf32>
      %c0_5 = arith.constant 0 : index
      %c0_6 = arith.constant 0 : index
      %16 = vector.load %arg7[%c0_5, %c0_6] : memref<16x128xf32, #tpu.memory_space<vmem>>, vector<16x128xf32>
      %c0_7 = arith.constant 0 : index
      %c0_8 = arith.constant 0 : index
      %17 = vector.load %arg8[%c0_7, %c0_8] : memref<16x128xf32, #tpu.memory_space<vmem>>, vector<16x128xf32>
      %c0_9 = arith.constant 0 : index
      %c0_10 = arith.constant 0 : index
      %18 = vector.load %arg9[%c0_9, %c0_10] : memref<16x128xf32, #tpu.memory_space<vmem>>, vector<16x128xf32>
      %c0_11 = arith.constant 0 : index
      %c0_12 = arith.constant 0 : index
      %19 = vector.load %arg10[%c0_11, %c0_12] : memref<16x128xf32, #tpu.memory_space<vmem>>, vector<16x128xf32>
      %20 = arith.index_cast %8 : i32 to index
      %c0_13 = arith.constant 0 : index
      %c0_14 = arith.constant 0 : index
      %21 = vector.load %arg2[%20, %c0_13, %c0_14] : memref<8x16x512xbf16, #tpu.memory_space<vmem>>, vector<1x16x512xbf16>
      %22 = vector.shape_cast %21 : vector<1x16x512xbf16> to vector<16x512xbf16>
      %23 = arith.extf %22 : vector<16x512xbf16> to vector<16x512xf32>
      %24 = arith.truncf %16 : vector<16x128xf32> to vector<16x128xbf16>
      %c0_15 = arith.constant 0 : index
      %c0_16 = arith.constant 0 : index
      %c0_17 = arith.constant 0 : index
      %25 = vector.load %arg4[%c0_15, %c0_16, %c0_17] : memref<2x128x512xbf16, #tpu.memory_space<vmem>>, vector<1x128x512xbf16>
      %26 = vector.shape_cast %25 : vector<1x128x512xbf16> to vector<128x512xbf16>
      %cst_18 = arith.constant dense<0.000000e+00> : vector<16x512xf32>
      %27 = tpu.matmul %24, %26, %cst_18 {dimension_numbers = #tpu.dot_dimension_numbers<[1], [0], [0], [1], [0, 0, 1, 1], [], []>} : vector<16x128xbf16>, vector<128x512xbf16>, vector<16x512xf32> -> vector<16x512xf32>
      %28 = arith.addf %23, %27 : vector<16x512xf32>
      %29 = arith.index_cast %8 : i32 to index
      %c0_19 = arith.constant 0 : index
      %c0_20 = arith.constant 0 : index
      %30 = vector.load %arg3[%29, %c0_19, %c0_20] : memref<8x16x512xbf16, #tpu.memory_space<vmem>>, vector<1x16x512xbf16>
      %31 = vector.shape_cast %30 : vector<1x16x512xbf16> to vector<16x512xbf16>
      %32 = arith.extf %31 : vector<16x512xbf16> to vector<16x512xf32>
      %33 = arith.truncf %18 : vector<16x128xf32> to vector<16x128xbf16>
      %c1 = arith.constant 1 : index
      %c0_21 = arith.constant 0 : index
      %c0_22 = arith.constant 0 : index
      %34 = vector.load %arg4[%c1, %c0_21, %c0_22] : memref<2x128x512xbf16, #tpu.memory_space<vmem>>, vector<1x128x512xbf16>
      %35 = vector.shape_cast %34 : vector<1x128x512xbf16> to vector<128x512xbf16>
      %cst_23 = arith.constant dense<0.000000e+00> : vector<16x512xf32>
      %36 = tpu.matmul %33, %35, %cst_23 {dimension_numbers = #tpu.dot_dimension_numbers<[1], [0], [0], [1], [0, 0, 1, 1], [], []>} : vector<16x128xbf16>, vector<128x512xbf16>, vector<16x512xf32> -> vector<16x512xf32>
      %37 = arith.addf %32, %36 : vector<16x512xf32>
      %38 = vector.extract_strided_slice %28 {offsets = [0, 0], sizes = [16, 384], strides = [1, 1]} : vector<16x512xf32> to vector<16x384xf32>
      %39 = arith.negf %38 : vector<16x384xf32>
      %40 = math.exp %39 : vector<16x384xf32>
      %cst_24 = arith.constant 1.000000e+00 : f32
      %41 = vector.broadcast %cst_24 : f32 to vector<16x384xf32>
      %42 = arith.addf %41, %40 : vector<16x384xf32>
      %43 = arith.divf %41, %42 : vector<16x384xf32>
      %44 = vector.extract_strided_slice %43 {offsets = [0, 0], sizes = [16, 128], strides = [1, 1]} : vector<16x384xf32> to vector<16x128xf32>
      %45 = vector.extract_strided_slice %43 {offsets = [0, 128], sizes = [16, 128], strides = [1, 1]} : vector<16x384xf32> to vector<16x128xf32>
      %46 = vector.extract_strided_slice %43 {offsets = [0, 256], sizes = [16, 128], strides = [1, 1]} : vector<16x384xf32> to vector<16x128xf32>
      %47 = vector.extract_strided_slice %28 {offsets = [0, 384], sizes = [16, 128], strides = [1, 1]} : vector<16x512xf32> to vector<16x128xf32>
      %48 = math.tanh %47 : vector<16x128xf32>
      %49 = arith.mulf %45, %17 : vector<16x128xf32>
      %50 = arith.mulf %44, %48 : vector<16x128xf32>
      %51 = arith.addf %49, %50 : vector<16x128xf32>
      %52 = math.tanh %51 : vector<16x128xf32>
      %53 = arith.mulf %46, %52 : vector<16x128xf32>
      %54 = vector.shape_cast %12 : vector<16x1xi1> to vector<16x1xi1>
      %55 = vector.broadcast %54 : vector<16x1xi1> to vector<16x128xi1>
      %56 = arith.select %55, %51, %17 : vector<16x128xi1>, vector<16x128xf32>
      %57 = vector.shape_cast %12 : vector<16x1xi1> to vector<16x1xi1>
      %58 = vector.broadcast %57 : vector<16x1xi1> to vector<16x128xi1>
      %59 = arith.select %58, %53, %16 : vector<16x128xi1>, vector<16x128xf32>
      %60 = vector.extract_strided_slice %37 {offsets = [0, 0], sizes = [16, 384], strides = [1, 1]} : vector<16x512xf32> to vector<16x384xf32>
      %61 = arith.negf %60 : vector<16x384xf32>
      %62 = math.exp %61 : vector<16x384xf32>
      %cst_25 = arith.constant 1.000000e+00 : f32
      %63 = vector.broadcast %cst_25 : f32 to vector<16x384xf32>
      %64 = arith.addf %63, %62 : vector<16x384xf32>
      %65 = arith.divf %63, %64 : vector<16x384xf32>
      %66 = vector.extract_strided_slice %65 {offsets = [0, 0], sizes = [16, 128], strides = [1, 1]} : vector<16x384xf32> to vector<16x128xf32>
      %67 = vector.extract_strided_slice %65 {offsets = [0, 128], sizes = [16, 128], strides = [1, 1]} : vector<16x384xf32> to vector<16x128xf32>
      %68 = vector.extract_strided_slice %65 {offsets = [0, 256], sizes = [16, 128], strides = [1, 1]} : vector<16x384xf32> to vector<16x128xf32>
      %69 = vector.extract_strided_slice %37 {offsets = [0, 384], sizes = [16, 128], strides = [1, 1]} : vector<16x512xf32> to vector<16x128xf32>
      %70 = math.tanh %69 : vector<16x128xf32>
      %71 = arith.mulf %67, %19 : vector<16x128xf32>
      %72 = arith.mulf %66, %70 : vector<16x128xf32>
      %73 = arith.addf %71, %72 : vector<16x128xf32>
      %74 = math.tanh %73 : vector<16x128xf32>
      %75 = arith.mulf %68, %74 : vector<16x128xf32>
      %76 = vector.shape_cast %15 : vector<16x1xi1> to vector<16x1xi1>
      %77 = vector.broadcast %76 : vector<16x1xi1> to vector<16x128xi1>
      %78 = arith.select %77, %73, %19 : vector<16x128xi1>, vector<16x128xf32>
      %79 = vector.shape_cast %15 : vector<16x1xi1> to vector<16x1xi1>
      %80 = vector.broadcast %79 : vector<16x1xi1> to vector<16x128xi1>
      %81 = arith.select %80, %75, %18 : vector<16x128xi1>, vector<16x128xf32>
      %c0_26 = arith.constant 0 : index
      %c0_27 = arith.constant 0 : index
      %82 = vector.load %arg7[%c0_26, %c0_27] : memref<16x128xf32, #tpu.memory_space<vmem>>, vector<16x128xf32>
      tpu.vector_store %arg7[%c0_26, %c0_27], %59 {strides = array<i32>} : memref<16x128xf32, #tpu.memory_space<vmem>>, vector<16x128xf32>,
      %c0_28 = arith.constant 0 : index
      %c0_29 = arith.constant 0 : index
      %83 = vector.load %arg8[%c0_28, %c0_29] : memref<16x128xf32, #tpu.memory_space<vmem>>, vector<16x128xf32>
      tpu.vector_store %arg8[%c0_28, %c0_29], %56 {strides = array<i32>} : memref<16x128xf32, #tpu.memory_space<vmem>>, vector<16x128xf32>,
      %c0_30 = arith.constant 0 : index
      %c0_31 = arith.constant 0 : index
      %84 = vector.load %arg9[%c0_30, %c0_31] : memref<16x128xf32, #tpu.memory_space<vmem>>, vector<16x128xf32>
      tpu.vector_store %arg9[%c0_30, %c0_31], %81 {strides = array<i32>} : memref<16x128xf32, #tpu.memory_space<vmem>>, vector<16x128xf32>,
      %c0_32 = arith.constant 0 : index
      %c0_33 = arith.constant 0 : index
      %85 = vector.load %arg10[%c0_32, %c0_33] : memref<16x128xf32, #tpu.memory_space<vmem>>, vector<16x128xf32>
      tpu.vector_store %arg10[%c0_32, %c0_33], %78 {strides = array<i32>} : memref<16x128xf32, #tpu.memory_space<vmem>>, vector<16x128xf32>,
      %cst_34 = arith.constant 0.000000e+00 : f32
      %86 = vector.shape_cast %12 : vector<16x1xi1> to vector<16x1xi1>
      %87 = vector.broadcast %86 : vector<16x1xi1> to vector<16x128xi1>
      %88 = vector.broadcast %cst_34 : f32 to vector<16x128xf32>
      %89 = arith.select %87, %59, %88 : vector<16x128xi1>, vector<16x128xf32>
      %90 = arith.index_cast %8 : i32 to index
      %c0_35 = arith.constant 0 : index
      %c0_36 = arith.constant 0 : index
      %91 = vector.load %arg5[%90, %c0_35, %c0_36] : memref<8x16x128xf32, #tpu.memory_space<vmem>>, vector<1x16x128xf32>
      %92 = vector.shape_cast %91 : vector<1x16x128xf32> to vector<16x128xf32>
      %93 = vector.shape_cast %89 : vector<16x128xf32> to vector<1x16x128xf32>
      tpu.vector_store %arg5[%90, %c0_35, %c0_36], %93 {strides = array<i32>} : memref<8x16x128xf32, #tpu.memory_space<vmem>>, vector<1x16x128xf32>,
      %cst_37 = arith.constant 0.000000e+00 : f32
      %94 = vector.shape_cast %15 : vector<16x1xi1> to vector<16x1xi1>
      %95 = vector.broadcast %94 : vector<16x1xi1> to vector<16x128xi1>
      %96 = vector.broadcast %cst_37 : f32 to vector<16x128xf32>
      %97 = arith.select %95, %81, %96 : vector<16x128xi1>, vector<16x128xf32>
      %98 = arith.index_cast %8 : i32 to index
      %c0_38 = arith.constant 0 : index
      %c0_39 = arith.constant 0 : index
      %99 = vector.load %arg6[%98, %c0_38, %c0_39] : memref<8x16x128xf32, #tpu.memory_space<vmem>>, vector<1x16x128xf32>
      %100 = vector.shape_cast %99 : vector<1x16x128xf32> to vector<16x128xf32>
      %101 = vector.shape_cast %97 : vector<16x128xf32> to vector<1x16x128xf32>
      tpu.vector_store %arg6[%98, %c0_38, %c0_39], %101 {strides = array<i32>} : memref<8x16x128xf32, #tpu.memory_space<vmem>>, vector<1x16x128xf32>,
      %c2_i32_40 = arith.constant 2 : i32
      %102 = arith.muli %arg11, %c2_i32_40 : i32
      %c1_i32_41 = arith.constant 1 : i32
      %103 = arith.addi %102, %c1_i32_41 : i32
      %104 = arith.sitofp %103 : i32 to f32
      %105 = arith.addf %5, %104 : f32
      %106 = vector.broadcast %105 : f32 to vector<16x1xf32>
      %107 = arith.cmpf ogt, %3, %106 : vector<16x1xf32>
      %cst_42 = arith.constant 7.000000e+00 : f32
      %108 = arith.subf %cst_42, %105 : f32
      %109 = vector.broadcast %108 : f32 to vector<16x1xf32>
      %110 = arith.cmpf ogt, %3, %109 : vector<16x1xf32>
      %c0_43 = arith.constant 0 : index
      %c0_44 = arith.constant 0 : index
      %111 = vector.load %arg7[%c0_43, %c0_44] : memref<16x128xf32, #tpu.memory_space<vmem>>, vector<16x128xf32>
      %c0_45 = arith.constant 0 : index
      %c0_46 = arith.constant 0 : index
      %112 = vector.load %arg8[%c0_45, %c0_46] : memref<16x128xf32, #tpu.memory_space<vmem>>, vector<16x128xf32>
      %c0_47 = arith.constant 0 : index
      %c0_48 = arith.constant 0 : index
      %113 = vector.load %arg9[%c0_47, %c0_48] : memref<16x128xf32, #tpu.memory_space<vmem>>, vector<16x128xf32>
      %c0_49 = arith.constant 0 : index
      %c0_50 = arith.constant 0 : index
      %114 = vector.load %arg10[%c0_49, %c0_50] : memref<16x128xf32, #tpu.memory_space<vmem>>, vector<16x128xf32>
      %115 = arith.index_cast %103 : i32 to index
      %c0_51 = arith.constant 0 : index
      %c0_52 = arith.constant 0 : index
      %116 = vector.load %arg2[%115, %c0_51, %c0_52] : memref<8x16x512xbf16, #tpu.memory_space<vmem>>, vector<1x16x512xbf16>
      %117 = vector.shape_cast %116 : vector<1x16x512xbf16> to vector<16x512xbf16>
      %118 = arith.extf %117 : vector<16x512xbf16> to vector<16x512xf32>
      %119 = arith.truncf %111 : vector<16x128xf32> to vector<16x128xbf16>
      %c0_53 = arith.constant 0 : index
      %c0_54 = arith.constant 0 : index
      %c0_55 = arith.constant 0 : index
      %120 = vector.load %arg4[%c0_53, %c0_54, %c0_55] : memref<2x128x512xbf16, #tpu.memory_space<vmem>>, vector<1x128x512xbf16>
      %121 = vector.shape_cast %120 : vector<1x128x512xbf16> to vector<128x512xbf16>
      %cst_56 = arith.constant dense<0.000000e+00> : vector<16x512xf32>
      %122 = tpu.matmul %119, %121, %cst_56 {dimension_numbers = #tpu.dot_dimension_numbers<[1], [0], [0], [1], [0, 0, 1, 1], [], []>} : vector<16x128xbf16>, vector<128x512xbf16>, vector<16x512xf32> -> vector<16x512xf32>
      %123 = arith.addf %118, %122 : vector<16x512xf32>
      %124 = arith.index_cast %103 : i32 to index
      %c0_57 = arith.constant 0 : index
      %c0_58 = arith.constant 0 : index
      %125 = vector.load %arg3[%124, %c0_57, %c0_58] : memref<8x16x512xbf16, #tpu.memory_space<vmem>>, vector<1x16x512xbf16>
      %126 = vector.shape_cast %125 : vector<1x16x512xbf16> to vector<16x512xbf16>
      %127 = arith.extf %126 : vector<16x512xbf16> to vector<16x512xf32>
      %128 = arith.truncf %113 : vector<16x128xf32> to vector<16x128xbf16>
      %c1_59 = arith.constant 1 : index
      %c0_60 = arith.constant 0 : index
      %c0_61 = arith.constant 0 : index
      %129 = vector.load %arg4[%c1_59, %c0_60, %c0_61] : memref<2x128x512xbf16, #tpu.memory_space<vmem>>, vector<1x128x512xbf16>
      %130 = vector.shape_cast %129 : vector<1x128x512xbf16> to vector<128x512xbf16>
      %cst_62 = arith.constant dense<0.000000e+00> : vector<16x512xf32>
      %131 = tpu.matmul %128, %130, %cst_62 {dimension_numbers = #tpu.dot_dimension_numbers<[1], [0], [0], [1], [0, 0, 1, 1], [], []>} : vector<16x128xbf16>, vector<128x512xbf16>, vector<16x512xf32> -> vector<16x512xf32>
      %132 = arith.addf %127, %131 : vector<16x512xf32>
      %133 = vector.extract_strided_slice %123 {offsets = [0, 0], sizes = [16, 384], strides = [1, 1]} : vector<16x512xf32> to vector<16x384xf32>
      %134 = arith.negf %133 : vector<16x384xf32>
      %135 = math.exp %134 : vector<16x384xf32>
      %cst_63 = arith.constant 1.000000e+00 : f32
      %136 = vector.broadcast %cst_63 : f32 to vector<16x384xf32>
      %137 = arith.addf %136, %135 : vector<16x384xf32>
      %138 = arith.divf %136, %137 : vector<16x384xf32>
      %139 = vector.extract_strided_slice %138 {offsets = [0, 0], sizes = [16, 128], strides = [1, 1]} : vector<16x384xf32> to vector<16x128xf32>
      %140 = vector.extract_strided_slice %138 {offsets = [0, 128], sizes = [16, 128], strides = [1, 1]} : vector<16x384xf32> to vector<16x128xf32>
      %141 = vector.extract_strided_slice %138 {offsets = [0, 256], sizes = [16, 128], strides = [1, 1]} : vector<16x384xf32> to vector<16x128xf32>
      %142 = vector.extract_strided_slice %123 {offsets = [0, 384], sizes = [16, 128], strides = [1, 1]} : vector<16x512xf32> to vector<16x128xf32>
      %143 = math.tanh %142 : vector<16x128xf32>
      %144 = arith.mulf %140, %112 : vector<16x128xf32>
      %145 = arith.mulf %139, %143 : vector<16x128xf32>
      %146 = arith.addf %144, %145 : vector<16x128xf32>
      %147 = math.tanh %146 : vector<16x128xf32>
      %148 = arith.mulf %141, %147 : vector<16x128xf32>
      %149 = vector.shape_cast %107 : vector<16x1xi1> to vector<16x1xi1>
      %150 = vector.broadcast %149 : vector<16x1xi1> to vector<16x128xi1>
      %151 = arith.select %150, %146, %112 : vector<16x128xi1>, vector<16x128xf32>
      %152 = vector.shape_cast %107 : vector<16x1xi1> to vector<16x1xi1>
      %153 = vector.broadcast %152 : vector<16x1xi1> to vector<16x128xi1>
      %154 = arith.select %153, %148, %111 : vector<16x128xi1>, vector<16x128xf32>
      %155 = vector.extract_strided_slice %132 {offsets = [0, 0], sizes = [16, 384], strides = [1, 1]} : vector<16x512xf32> to vector<16x384xf32>
      %156 = arith.negf %155 : vector<16x384xf32>
      %157 = math.exp %156 : vector<16x384xf32>
      %cst_64 = arith.constant 1.000000e+00 : f32
      %158 = vector.broadcast %cst_64 : f32 to vector<16x384xf32>
      %159 = arith.addf %158, %157 : vector<16x384xf32>
      %160 = arith.divf %158, %159 : vector<16x384xf32>
      %161 = vector.extract_strided_slice %160 {offsets = [0, 0], sizes = [16, 128], strides = [1, 1]} : vector<16x384xf32> to vector<16x128xf32>
      %162 = vector.extract_strided_slice %160 {offsets = [0, 128], sizes = [16, 128], strides = [1, 1]} : vector<16x384xf32> to vector<16x128xf32>
      %163 = vector.extract_strided_slice %160 {offsets = [0, 256], sizes = [16, 128], strides = [1, 1]} : vector<16x384xf32> to vector<16x128xf32>
      %164 = vector.extract_strided_slice %132 {offsets = [0, 384], sizes = [16, 128], strides = [1, 1]} : vector<16x512xf32> to vector<16x128xf32>
      %165 = math.tanh %164 : vector<16x128xf32>
      %166 = arith.mulf %162, %114 : vector<16x128xf32>
      %167 = arith.mulf %161, %165 : vector<16x128xf32>
      %168 = arith.addf %166, %167 : vector<16x128xf32>
      %169 = math.tanh %168 : vector<16x128xf32>
      %170 = arith.mulf %163, %169 : vector<16x128xf32>
      %171 = vector.shape_cast %110 : vector<16x1xi1> to vector<16x1xi1>
      %172 = vector.broadcast %171 : vector<16x1xi1> to vector<16x128xi1>
      %173 = arith.select %172, %168, %114 : vector<16x128xi1>, vector<16x128xf32>
      %174 = vector.shape_cast %110 : vector<16x1xi1> to vector<16x1xi1>
      %175 = vector.broadcast %174 : vector<16x1xi1> to vector<16x128xi1>
      %176 = arith.select %175, %170, %113 : vector<16x128xi1>, vector<16x128xf32>
      %c0_65 = arith.constant 0 : index
      %c0_66 = arith.constant 0 : index
      %177 = vector.load %arg7[%c0_65, %c0_66] : memref<16x128xf32, #tpu.memory_space<vmem>>, vector<16x128xf32>
      tpu.vector_store %arg7[%c0_65, %c0_66], %154 {strides = array<i32>} : memref<16x128xf32, #tpu.memory_space<vmem>>, vector<16x128xf32>,
      %c0_67 = arith.constant 0 : index
      %c0_68 = arith.constant 0 : index
      %178 = vector.load %arg8[%c0_67, %c0_68] : memref<16x128xf32, #tpu.memory_space<vmem>>, vector<16x128xf32>
      tpu.vector_store %arg8[%c0_67, %c0_68], %151 {strides = array<i32>} : memref<16x128xf32, #tpu.memory_space<vmem>>, vector<16x128xf32>,
      %c0_69 = arith.constant 0 : index
      %c0_70 = arith.constant 0 : index
      %179 = vector.load %arg9[%c0_69, %c0_70] : memref<16x128xf32, #tpu.memory_space<vmem>>, vector<16x128xf32>
      tpu.vector_store %arg9[%c0_69, %c0_70], %176 {strides = array<i32>} : memref<16x128xf32, #tpu.memory_space<vmem>>, vector<16x128xf32>,
      %c0_71 = arith.constant 0 : index
      %c0_72 = arith.constant 0 : index
      %180 = vector.load %arg10[%c0_71, %c0_72] : memref<16x128xf32, #tpu.memory_space<vmem>>, vector<16x128xf32>
      tpu.vector_store %arg10[%c0_71, %c0_72], %173 {strides = array<i32>} : memref<16x128xf32, #tpu.memory_space<vmem>>, vector<16x128xf32>,
      %cst_73 = arith.constant 0.000000e+00 : f32
      %181 = vector.shape_cast %107 : vector<16x1xi1> to vector<16x1xi1>
      %182 = vector.broadcast %181 : vector<16x1xi1> to vector<16x128xi1>
      %183 = vector.broadcast %cst_73 : f32 to vector<16x128xf32>
      %184 = arith.select %182, %154, %183 : vector<16x128xi1>, vector<16x128xf32>
      %185 = arith.index_cast %103 : i32 to index
      %c0_74 = arith.constant 0 : index
      %c0_75 = arith.constant 0 : index
      %186 = vector.load %arg5[%185, %c0_74, %c0_75] : memref<8x16x128xf32, #tpu.memory_space<vmem>>, vector<1x16x128xf32>
      %187 = vector.shape_cast %186 : vector<1x16x128xf32> to vector<16x128xf32>
      %188 = vector.shape_cast %184 : vector<16x128xf32> to vector<1x16x128xf32>
      tpu.vector_store %arg5[%185, %c0_74, %c0_75], %188 {strides = array<i32>} : memref<8x16x128xf32, #tpu.memory_space<vmem>>, vector<1x16x128xf32>,
      %cst_76 = arith.constant 0.000000e+00 : f32
      %189 = vector.shape_cast %110 : vector<16x1xi1> to vector<16x1xi1>
      %190 = vector.broadcast %189 : vector<16x1xi1> to vector<16x128xi1>
      %191 = vector.broadcast %cst_76 : f32 to vector<16x128xf32>
      %192 = arith.select %190, %176, %191 : vector<16x128xi1>, vector<16x128xf32>
      %193 = arith.index_cast %103 : i32 to index
      %c0_77 = arith.constant 0 : index
      %c0_78 = arith.constant 0 : index
      %194 = vector.load %arg6[%193, %c0_77, %c0_78] : memref<8x16x128xf32, #tpu.memory_space<vmem>>, vector<1x16x128xf32>
      %195 = vector.shape_cast %194 : vector<1x16x128xf32> to vector<16x128xf32>
      %196 = vector.shape_cast %192 : vector<16x128xf32> to vector<1x16x128xf32>
      tpu.vector_store %arg6[%193, %c0_77, %c0_78], %196 {strides = array<i32>} : memref<8x16x128xf32, #tpu.memory_space<vmem>>, vector<1x16x128xf32>,
    }
    %c4_i32_3 = arith.constant 4 : i32
    return
  }
  func.func @transform_0(%arg0: i32) -> (i32, i32) {
    %c0_i32 = arith.constant 0 : i32
    %c0_i32_0 = arith.constant 0 : i32
    %c0_i32_1 = arith.constant 0 : i32
    return %c0_i32, %c0_i32_0 : i32, i32
  }
  func.func @transform_1(%arg0: i32) -> (i32, i32, i32) {
    %c0_i32 = arith.constant 0 : i32
    %c0_i32_0 = arith.constant 0 : i32
    %c0_i32_1 = arith.constant 0 : i32
    return %arg0, %c0_i32, %c0_i32_0 : i32, i32, i32
  }
  func.func @transform_2(%arg0: i32) -> (i32, i32, i32) {
    %c0_i32 = arith.constant 0 : i32
    %c0_i32_0 = arith.constant 0 : i32
    %c0_i32_1 = arith.constant 0 : i32
    return %arg0, %c0_i32, %c0_i32_0 : i32, i32, i32
  }
  func.func @transform_3(%arg0: i32) -> (i32, i32, i32) {
    %c0_i32 = arith.constant 0 : i32
    %c0_i32_0 = arith.constant 0 : i32
    %c0_i32_1 = arith.constant 0 : i32
    %c0_i32_2 = arith.constant 0 : i32
    return %c0_i32, %c0_i32_0, %c0_i32_1 : i32, i32, i32
  }
  func.func @transform_4(%arg0: i32) -> (i32, i32, i32) {
    %c0_i32 = arith.constant 0 : i32
    %c0_i32_0 = arith.constant 0 : i32
    %c0_i32_1 = arith.constant 0 : i32
    return %arg0, %c0_i32, %c0_i32_0 : i32, i32, i32
  }
  func.func @transform_5(%arg0: i32) -> (i32, i32, i32) {
    %c0_i32 = arith.constant 0 : i32
    %c0_i32_0 = arith.constant 0 : i32
    %c0_i32_1 = arith.constant 0 : i32
    return %arg0, %c0_i32, %c0_i32_0 : i32, i32, i32
  }
}

</mosaic_0001>

<llo_original>
// kernel: tpu_custom_call.1
$region0: #{tpu_custom_call.1}
  #allocation0 [shape = 'u32[]', space=smem, size = 0x4, offset = 0x4, fixed_abs, tag = 'smem constant byte address 0x4 - core index']
  #allocation1 [shape = 'u32[144,128]{1,0:T(1,128)}', space=vmem, size = 0x12000, scoped, tag = 'internal scratch']
  #allocation2 [shape = 'f32[16,128]{1,0:T(8,128)}', space=vmem, size = 0x2000, scoped, tag = 'scratch operand']
  #allocation3 [shape = 'f32[16,128]{1,0:T(8,128)}', space=vmem, size = 0x2000, scoped, tag = 'scratch operand']
  #allocation4 [shape = 'f32[16,128]{1,0:T(8,128)}', space=vmem, size = 0x2000, scoped, tag = 'scratch operand']
  #allocation5 [shape = 'f32[16,128]{1,0:T(8,128)}', space=vmem, size = 0x2000, scoped, tag = 'scratch operand']
  %s0 = inlined_call_operand.vmem [shape: f32[16,1], index: 0, kind: input, shape index: {}]
  %s1 = inlined_call_operand.hbm [shape: bf16[8,16,512], index: 1, kind: input, shape index: {}]
  %s2 = inlined_call_operand.hbm [shape: bf16[8,16,512], index: 2, kind: input, shape index: {}]
  %s3 = inlined_call_operand.hbm [shape: bf16[2,128,512], index: 3, kind: input, shape index: {}]
  %s4 = inlined_call_operand.hbm [shape: f32[8,16,128], index: 4, kind: output, shape index: {0}]
  %s5 = inlined_call_operand.hbm [shape: f32[8,16,128], index: 5, kind: output, shape index: {1}]
  %6 = xla_tuple %s4, %s5
  %s7 = sld [smem:[#allocation0]]
  $region57: #{tpu_custom_call.1} parent=0
    _
  %s9 = ssub.s32 1, %s7
  %s10 = scalar_select 0, %s9, %s7
  $region1: #{tpu_custom_call.1} parent=0
    #allocation6 [shape = 'u8[131072]{0}', space=vmem, size = 0x20000, scoped, tag = 'input window, operand 1, single buffered']
    #allocation7 [shape = 's32[1]{0}', space=sflag, size = 0x4, scoped, tag = 'scoped memory for tpu_custom_call.1']
    #allocation8 [shape = 's32[1]{0}', space=sflag, size = 0x4, scoped, tag = 'scoped memory for tpu_custom_call.1']
    #allocation9 [shape = 'u8[131072]{0}', space=vmem, size = 0x20000, scoped, tag = 'input window, operand 2, single buffered']
    #allocation10 [shape = 's32[1]{0}', space=sflag, size = 0x4, scoped, tag = 'scoped memory for tpu_custom_call.1']
    #allocation11 [shape = 'u8[262144]{0}', space=vmem, size = 0x40000, scoped, tag = 'input window, operand 3, single buffered']
    #allocation12 [shape = 'u8[65536]{0}', space=vmem, size = 0x10000, scoped, tag = 'output window, operand 0, single buffered']
    #allocation13 [shape = 'u8[65536]{0}', space=vmem, size = 0x10000, scoped, tag = 'output window, operand 1, single buffered']
    #allocation14 [shape = 's32[1]{0}', space=sflag, size = 0x4, scoped, tag = 'scoped memory for tpu_custom_call.1']
    %11 = vsyncpa [#allocation7], 0
    %12 = vsyncpa [#allocation10], 0
    %13 = vsyncpa [#allocation8], 0
    %14 = vsyncpa [#allocation14], 0
    // Predicated region
    $region2: #{tpu_custom_call.1} parent=1 // pred_check
      _
    $region3: #{tpu_custom_call.1} parent=1 // pred_check_branch
      %16 = sbr.rel (0) target = $region5
    $region4: #{tpu_custom_call.1} parent=1 // pred_region
      _
    $region5: #{tpu_custom_call.1} parent=1 // pred_fallthru
      _
    // Predicated region
    $region6: #{tpu_custom_call.1} parent=1 // pred_check
      _
    $region7: #{tpu_custom_call.1} parent=1 // pred_check_branch
      %18 = sbr.rel (0) target = $region9
    $region8: #{tpu_custom_call.1} parent=1 // pred_region
      %s20 = ssub.s32 4096, 4096
      %21 = vsyncadd [#allocation7], %s20
      %s22 = sshll.u32 [#allocation6], 4
      %s23 = int_to_ptr.vmem [resolvable:$true] %s22
      %28 = dma.hbm_to_vmem [thread:$0]  %s1, 4096, %s23, [#allocation7], 256, 256, 16
    $region9: #{tpu_custom_call.1} parent=1 // pred_fallthru
      _
    // Predicated region
    $region10: #{tpu_custom_call.1} parent=1 // pred_check
      _
    $region11: #{tpu_custom_call.1} parent=1 // pred_check_branch
      %30 = sbr.rel (0) target = $region13
    $region12: #{tpu_custom_call.1} parent=1 // pred_region
      %s32 = ssub.s32 4096, 4096
      %33 = vsyncadd [#allocation10], %s32
      %s34 = sshll.u32 [#allocation9], 4
      %s35 = int_to_ptr.vmem [resolvable:$true] %s34
      %40 = dma.hbm_to_vmem [thread:$0]  %s2, 4096, %s35, [#allocation10], 256, 256, 16
    $region13: #{tpu_custom_call.1} parent=1 // pred_fallthru
      _
    // Predicated region
    $region14: #{tpu_custom_call.1} parent=1 // pred_check
      _
    $region15: #{tpu_custom_call.1} parent=1 // pred_check_branch
      %42 = sbr.rel (0) target = $region17
    $region16: #{tpu_custom_call.1} parent=1 // pred_region
      %s44 = ssub.s32 8192, 8192
      %45 = vsyncadd [#allocation10], %s44
      %s46 = sshll.u32 [#allocation11], 4
      %s47 = int_to_ptr.vmem [resolvable:$true] %s46
      %52 = dma.hbm_to_vmem [thread:$0]  %s3, 8192, %s47, [#allocation10], 256, 256, 16
    $region17: #{tpu_custom_call.1} parent=1 // pred_fallthru
      _
    // Predicated region
    $region18: #{tpu_custom_call.1} parent=1 // pred_check
      _
    $region19: #{tpu_custom_call.1} parent=1 // pred_check_branch
      %54 = sbr.rel (0) target = $region21
    $region20: #{tpu_custom_call.1} parent=1 // pred_region
      %55 = dma.done [#allocation7], 4096
    $region21: #{tpu_custom_call.1} parent=1 // pred_fallthru
      _
    // Predicated region
    $region22: #{tpu_custom_call.1} parent=1 // pred_check
      _
    $region23: #{tpu_custom_call.1} parent=1 // pred_check_branch
      %57 = sbr.rel (0) target = $region25
    $region24: #{tpu_custom_call.1} parent=1 // pred_region
      %58 = dma.done [#allocation10], 4096
    $region25: #{tpu_custom_call.1} parent=1 // pred_fallthru
      _
    // Predicated region
    $region26: #{tpu_custom_call.1} parent=1 // pred_check
      _
    $region27: #{tpu_custom_call.1} parent=1 // pred_check_branch
      %60 = sbr.rel (0) target = $region29
    $region28: #{tpu_custom_call.1} parent=1 // pred_region
      %61 = dma.done [#allocation10], 8192
    $region29: #{tpu_custom_call.1} parent=1 // pred_fallthru
      _
    %p63 = scmp.eq.s32.totalorder 0, 0
    // Predicated region
    $region30: #{tpu_custom_call.1} parent=1 // pred_check
      %p64 = pneg %p63
    $region31: #{tpu_custom_call.1} parent=1 // pred_check_branch
      %66 = sbr.rel (%p64) target = $region33
    $region32: #{tpu_custom_call.1} parent=1 // pred_region
      %67 = vst [vmem:[#allocation2] sm:$0xff] 0.0
      %68 = vst [vmem:[#allocation2 + $0x8] sm:$0xff] 0.0
      %69 = vst [vmem:[#allocation3] sm:$0xff] 0.0
      %70 = vst [vmem:[#allocation3 + $0x8] sm:$0xff] 0.0
      %71 = vst [vmem:[#allocation4] sm:$0xff] 0.0
      %72 = vst [vmem:[#allocation4 + $0x8] sm:$0xff] 0.0
      %73 = vst [vmem:[#allocation5] sm:$0xff] 0.0
      %74 = vst [vmem:[#allocation5 + $0x8] sm:$0xff] 0.0
    $region33: #{tpu_custom_call.1} parent=1 // pred_fallthru
      _
    %v75 = vld [vmem:[%s0] sm:$0xff]
    %v76 = vld [vmem:[%s0 + $0x8] sm:$0xff]
    %s77 = smul.u32 0, 8
    %s78 = scvt.s32.f32 %s77
    loop: start=0, step=1, limit=4
    $region34: #{tpu_custom_call.1} parent=1 // loop_pre_header
      _
    $region35: #{tpu_custom_call.1} parent=1 // loop_header
      %s80 = sphi 0, %s84
      %p81 = scmp.ge.s32.totalorder %s80, 4
    $region36: #{tpu_custom_call.1} parent=1 // loop_header_branch
      %83 = sbr.rel (%p81) target = $region40
    $region37: #{tpu_custom_call.1} parent=1 // loop_body
      %s85 = smul.u32 %s80, 2
      %s86 = scvt.s32.f32 %s85
      %s87 = sadd.f32 %s78, %s86
      %v88 = vstv %s87
      %vm89 = vcmp.gt.f32.partialorder %v75, %v88
      %vm90 = vcmp.gt.f32.partialorder %v76, %v88
      %s91 = ssub.f32 7.0, %s87
      %v92 = vstv %s91
      %vm93 = vcmp.gt.f32.partialorder %v75, %v92
      %vm94 = vcmp.gt.f32.partialorder %v76, %v92
      %v95 = vld [vmem:[#allocation2] sm:$0xff]
      %v96 = vld [vmem:[#allocation2 + $0x8] sm:$0xff]
      %v97 = vld [vmem:[#allocation3] sm:$0xff]
      %v98 = vld [vmem:[#allocation3 + $0x8] sm:$0xff]
      %v99 = vld [vmem:[#allocation4] sm:$0xff]
      %v100 = vld [vmem:[#allocation4 + $0x8] sm:$0xff]
      %v101 = vld [vmem:[#allocation5] sm:$0xff]
      %v102 = vld [vmem:[#allocation5 + $0x8] sm:$0xff]
      %s103 = smul.u32 %s85, 8
      %s104 = smul.addr %s103, 4
      %s105 = scalar_lea.vmem [#allocation6], %s104
      %v106 = vld [vmem:[%s105] sm:$0xff]
      %v107 = vld [vmem:[%s105 + $0x8] sm:$0xff]
      %v108 = vld [vmem:[%s105 + $0x10] sm:$0xff]
      %v109 = vld [vmem:[%s105 + $0x18] sm:$0xff]
      %v110 = vunpack.c.l.bf16 %v106
      %v111 = vunpack.c.h.bf16 %v106
      %v112 = vunpack.c.l.bf16 %v107
      %v113 = vunpack.c.h.bf16 %v107
      %v114 = vunpack.c.l.bf16 %v108
      %v115 = vunpack.c.h.bf16 %v108
      %v116 = vunpack.c.l.bf16 %v109
      %v117 = vunpack.c.h.bf16 %v109
      %v118 = vpack.c.bf16 %v96, %v95
      %v119 = vld [vmem:[#allocation11] sm:$0xff]
      %v120 = vld [vmem:[#allocation11 + $0x8] sm:$0xff]
      %v121 = vld [vmem:[#allocation11 + $0x10] sm:$0xff]
      %v122 = vld [vmem:[#allocation11 + $0x18] sm:$0xff]
      %v123 = vld [vmem:[#allocation11 + $0x20] sm:$0xff]
      %v124 = vld [vmem:[#allocation11 + $0x28] sm:$0xff]
      %v125 = vld [vmem:[#allocation11 + $0x30] sm:$0xff]
      %v126 = vld [vmem:[#allocation11 + $0x38] sm:$0xff]
      %v127 = vld [vmem:[#allocation11 + $0x40] sm:$0xff]
      %v128 = vld [vmem:[#allocation11 + $0x48] sm:$0xff]
      %v129 = vld [vmem:[#allocation11 + $0x50] sm:$0xff]
      %v130 = vld [vmem:[#allocation11 + $0x58] sm:$0xff]
      %v131 = vld [vmem:[#allocation11 + $0x60] sm:$0xff]
      %v132 = vld [vmem:[#allocation11 + $0x68] sm:$0xff]
      %v133 = vld [vmem:[#allocation11 + $0x70] sm:$0xff]
      %v134 = vld [vmem:[#allocation11 + $0x78] sm:$0xff]
      %v135 = vld [vmem:[#allocation11 + $0x80] sm:$0xff]
      %v136 = vld [vmem:[#allocation11 + $0x88] sm:$0xff]
      %v137 = vld [vmem:[#allocation11 + $0x90] sm:$0xff]
      %v138 = vld [vmem:[#allocation11 + $0x98] sm:$0xff]
      %v139 = vld [vmem:[#allocation11 + $0xa0] sm:$0xff]
      %v140 = vld [vmem:[#allocation11 + $0xa8] sm:$0xff]
      %v141 = vld [vmem:[#allocation11 + $0xb0] sm:$0xff]
      %v142 = vld [vmem:[#allocation11 + $0xb8] sm:$0xff]
      %v143 = vld [vmem:[#allocation11 + $0xc0] sm:$0xff]
      %v144 = vld [vmem:[#allocation11 + $0xc8] sm:$0xff]
      %v145 = vld [vmem:[#allocation11 + $0xd0] sm:$0xff]
      %v146 = vld [vmem:[#allocation11 + $0xd8] sm:$0xff]
      %v147 = vld [vmem:[#allocation11 + $0xe0] sm:$0xff]
      %v148 = vld [vmem:[#allocation11 + $0xe8] sm:$0xff]
      %v149 = vld [vmem:[#allocation11 + $0xf0] sm:$0xff]
      %v150 = vld [vmem:[#allocation11 + $0xf8] sm:$0xff]
      %v183 = vunpack.c.l.b16 %v119
      %v184 = vunpack.c.h.b16 %v119
      %v185 = vunpack.c.l.b16 %v120
      %v186 = vunpack.c.h.b16 %v120
      %v187 = vunpack.c.l.b16 %v121
      %v188 = vunpack.c.h.b16 %v121
      %v189 = vunpack.c.l.b16 %v122
      %v190 = vunpack.c.h.b16 %v122
      %v191 = vunpack.c.l.b16 %v123
      %v192 = vunpack.c.h.b16 %v123
      %v193 = vunpack.c.l.b16 %v124
      %v194 = vunpack.c.h.b16 %v124
      %v195 = vunpack.c.l.b16 %v125
      %v196 = vunpack.c.h.b16 %v125
      %v197 = vunpack.c.l.b16 %v126
      %v198 = vunpack.c.h.b16 %v126
      %v199 = vunpack.c.l.b16 %v127
      %v200 = vunpack.c.h.b16 %v127
      %v201 = vunpack.c.l.b16 %v128
      %v202 = vunpack.c.h.b16 %v128
      %v203 = vunpack.c.l.b16 %v129
      %v204 = vunpack.c.h.b16 %v129
      %v205 = vunpack.c.l.b16 %v130
      %v206 = vunpack.c.h.b16 %v130
      %v207 = vunpack.c.l.b16 %v131
      %v208 = vunpack.c.h.b16 %v131
      %v209 = vunpack.c.l.b16 %v132
      %v210 = vunpack.c.h.b16 %v132
      %v211 = vunpack.c.l.b16 %v133
      %v212 = vunpack.c.h.b16 %v133
      %v213 = vunpack.c.l.b16 %v134
      %v214 = vunpack.c.h.b16 %v134
      %v215 = vunpack.c.l.b16 %v135
      %v216 = vunpack.c.h.b16 %v135
      %v217 = vunpack.c.l.b16 %v136
      %v218 = vunpack.c.h.b16 %v136
      %v219 = vunpack.c.l.b16 %v137
      %v220 = vunpack.c.h.b16 %v137
      %v221 = vunpack.c.l.b16 %v138
      %v222 = vunpack.c.h.b16 %v138
      %v223 = vunpack.c.l.b16 %v139
      %v224 = vunpack.c.h.b16 %v139
      %v225 = vunpack.c.l.b16 %v140
      %v226 = vunpack.c.h.b16 %v140
      %v227 = vunpack.c.l.b16 %v141
      %v228 = vunpack.c.h.b16 %v141
      %v229 = vunpack.c.l.b16 %v142
      %v230 = vunpack.c.h.b16 %v142
      %v231 = vunpack.c.l.b16 %v143
      %v232 = vunpack.c.h.b16 %v143
      %v233 = vunpack.c.l.b16 %v144
      %v234 = vunpack.c.h.b16 %v144
      %v235 = vunpack.c.l.b16 %v145
      %v236 = vunpack.c.h.b16 %v145
      %v237 = vunpack.c.l.b16 %v146
      %v238 = vunpack.c.h.b16 %v146
      %v239 = vunpack.c.l.b16 %v147
      %v240 = vunpack.c.h.b16 %v147
      %v241 = vunpack.c.l.b16 %v148
      %v242 = vunpack.c.h.b16 %v148
      %v243 = vunpack.c.l.b16 %v149
      %v244 = vunpack.c.h.b16 %v149
      %v245 = vunpack.c.l.b16 %v150
      %v246 = vunpack.c.h.b16 %v150
      %v247 = vpack.c.b16 %v187, %v183
      %v248 = vpack.c.b16 %v188, %v184
      %v249 = vpack.c.b16 %v189, %v185
      %v250 = vpack.c.b16 %v190, %v186
      %v251 = vpack.c.b16 %v195, %v191
      %v252 = vpack.c.b16 %v196, %v192
      %v253 = vpack.c.b16 %v197, %v193
      %v254 = vpack.c.b16 %v198, %v194
      %v255 = vpack.c.b16 %v203, %v199
      %v256 = vpack.c.b16 %v204, %v200
      %v257 = vpack.c.b16 %v205, %v201
      %v258 = vpack.c.b16 %v206, %v202
      %v259 = vpack.c.b16 %v211, %v207
      %v260 = vpack.c.b16 %v212, %v208
      %v261 = vpack.c.b16 %v213, %v209
      %v262 = vpack.c.b16 %v214, %v210
      %v263 = vpack.c.b16 %v219, %v215
      %v264 = vpack.c.b16 %v220, %v216
      %v265 = vpack.c.b16 %v221, %v217
      %v266 = vpack.c.b16 %v222, %v218
      %v267 = vpack.c.b16 %v227, %v223
      %v268 = vpack.c.b16 %v228, %v224
      %v269 = vpack.c.b16 %v229, %v225
      %v270 = vpack.c.b16 %v230, %v226
      %v271 = vpack.c.b16 %v235, %v231
      %v272 = vpack.c.b16 %v236, %v232
      %v273 = vpack.c.b16 %v237, %v233
      %v274 = vpack.c.b16 %v238, %v234
      %v275 = vpack.c.b16 %v243, %v239
      %v276 = vpack.c.b16 %v244, %v240
      %v277 = vpack.c.b16 %v245, %v241
      %v278 = vpack.c.b16 %v246, %v242
      %311 = vmatprep.subr.bf16.mxu0 %v248
      %312 = vmatpush1.bf16.msra.mxu0 %v247
      %313 = vmatprep.subr.bf16.mxu0 %v252
      %314 = vmatpush1.bf16.msra.mxu0 %v251
      %315 = vmatprep.subr.bf16.mxu0 %v256
      %316 = vmatpush1.bf16.msra.mxu0 %v255
      %317 = vmatprep.subr.bf16.mxu0 %v260
      %318 = vmatpush1.bf16.msra.mxu0 %v259
      %319 = vmatprep.subr.bf16.mxu0 %v264
      %320 = vmatpush1.bf16.msra.mxu0 %v263
      %321 = vmatprep.subr.bf16.mxu0 %v268
      %322 = vmatpush1.bf16.msra.mxu0 %v267
      %323 = vmatprep.subr.bf16.mxu0 %v272
      %324 = vmatpush1.bf16.msra.mxu0 %v271
      %325 = vmatprep.subr.bf16.mxu0 %v276
      %326 = vmatpush1.bf16.msra.mxu0 %v275
      %327 = vmatprep.subr.bf16.mxu0 0
      %328 = vmatpush1.bf16.msra.mxu0 0
      %329 = vmatprep.subr.bf16.mxu0 0
      %330 = vmatpush1.bf16.msra.mxu0 0
      %331 = vmatprep.subr.bf16.mxu0 0
      %332 = vmatpush1.bf16.msra.mxu0 0
      %333 = vmatprep.subr.bf16.mxu0 0
      %334 = vmatpush1.bf16.msra.mxu0 0
      %335 = vmatprep.subr.bf16.mxu0 0
      %336 = vmatpush1.bf16.msra.mxu0 0
      %337 = vmatprep.subr.bf16.mxu0 0
      %338 = vmatpush1.bf16.msra.mxu0 0
      %339 = vmatprep.subr.bf16.mxu0 0
      %340 = vmatpush1.bf16.msra.mxu0 0
      %341 = vmatprep.subr.bf16.mxu0 0
      %342 = vmatpush1.bf16.msra.mxu0 0
      %343 = vmatprep.mubr.bf16.mxu0 0
      %344 = vmatmul.mubr.bf16.gmra.mrb[0].mxu0 %v118
      %v345 = vpop.f32.mrb[0].mxu0
      %v346 = vadd.f32 0.0, %v345
      %v347 = vpop.f32.mrb[0].mxu0
      %v348 = vadd.f32 0.0, %v347
      %v349 = vpop.f32.mrb[0].mxu0
      %v350 = vadd.f32 0.0, %v349
      %v351 = vpop.f32.mrb[0].mxu0
      %v352 = vadd.f32 0.0, %v351
      %353 = vdwg.mxu0
      %354 = vmatprep.subr.bf16.mxu0 %v250
      %355 = vmatpush1.bf16.msra.mxu0 %v249
      %356 = vmatprep.subr.bf16.mxu0 %v254
      %357 = vmatpush1.bf16.msra.mxu0 %v253
      %358 = vmatprep.subr.bf16.mxu0 %v258
      %359 = vmatpush1.bf16.msra.mxu0 %v257
      %360 = vmatprep.subr.bf16.mxu0 %v262
      %361 = vmatpush1.bf16.msra.mxu0 %v261
      %362 = vmatprep.subr.bf16.mxu0 %v266
      %363 = vmatpush1.bf16.msra.mxu0 %v265
      %364 = vmatprep.subr.bf16.mxu0 %v270
      %365 = vmatpush1.bf16.msra.mxu0 %v269
      %366 = vmatprep.subr.bf16.mxu0 %v274
      %367 = vmatpush1.bf16.msra.mxu0 %v273
      %368 = vmatprep.subr.bf16.mxu0 %v278
      %369 = vmatpush1.bf16.msra.mxu0 %v277
      %370 = vmatprep.subr.bf16.mxu0 0
      %371 = vmatpush1.bf16.msra.mxu0 0
      %372 = vmatprep.subr.bf16.mxu0 0
      %373 = vmatpush1.bf16.msra.mxu0 0
      %374 = vmatprep.subr.bf16.mxu0 0
      %375 = vmatpush1.bf16.msra.mxu0 0
      %376 = vmatprep.subr.bf16.mxu0 0
      %377 = vmatpush1.bf16.msra.mxu0 0
      %378 = vmatprep.subr.bf16.mxu0 0
      %379 = vmatpush1.bf16.msra.mxu0 0
      %380 = vmatprep.subr.bf16.mxu0 0
      %381 = vmatpush1.bf16.msra.mxu0 0
      %382 = vmatprep.subr.bf16.mxu0 0
      %383 = vmatpush1.bf16.msra.mxu0 0
      %384 = vmatprep.subr.bf16.mxu0 0
      %385 = vmatpush1.bf16.msra.mxu0 0
      %386 = vmatprep.mubr.bf16.mxu0 0
      %387 = vmatmul.mubr.bf16.gmra.mrb[0].mxu0 %v118
      %v388 = vpop.f32.mrb[0].mxu0
      %v389 = vadd.f32 0.0, %v388
      %v390 = vpop.f32.mrb[0].mxu0
      %v391 = vadd.f32 0.0, %v390
      %v392 = vpop.f32.mrb[0].mxu0
      %v393 = vadd.f32 0.0, %v392
      %v394 = vpop.f32.mrb[0].mxu0
      %v395 = vadd.f32 0.0, %v394
      %396 = vdwg.mxu0
      %v397 = vadd.f32 %v110, %v346
      %v398 = vadd.f32 %v111, %v348
      %v399 = vadd.f32 %v112, %v389
      %v400 = vadd.f32 %v113, %v391
      %v401 = vadd.f32 %v114, %v350
      %v402 = vadd.f32 %v115, %v352
      %v403 = vadd.f32 %v116, %v393
      %v404 = vadd.f32 %v117, %v395
      %s405 = smul.addr %s103, 4
      %s406 = scalar_lea.vmem [#allocation9], %s405
      %v407 = vld [vmem:[%s406] sm:$0xff]
      %v408 = vld [vmem:[%s406 + $0x8] sm:$0xff]
      %v409 = vld [vmem:[%s406 + $0x10] sm:$0xff]
      %v410 = vld [vmem:[%s406 + $0x18] sm:$0xff]
      %v411 = vunpack.c.l.bf16 %v407
      %v412 = vunpack.c.h.bf16 %v407
      %v413 = vunpack.c.l.bf16 %v408
      %v414 = vunpack.c.h.bf16 %v408
      %v415 = vunpack.c.l.bf16 %v409
      %v416 = vunpack.c.h.bf16 %v409
      %v417 = vunpack.c.l.bf16 %v410
      %v418 = vunpack.c.h.bf16 %v410
      %v419 = vpack.c.bf16 %v100, %v99
      %s420 = scalar_lea.vmem [#allocation11], 256
      %v421 = vld [vmem:[%s420] sm:$0xff]
      %v422 = vld [vmem:[%s420 + $0x8] sm:$0xff]
      %v423 = vld [vmem:[%s420 + $0x10] sm:$0xff]
      %v424 = vld [vmem:[%s420 + $0x18] sm:$0xff]
      %v425 = vld [vmem:[%s420 + $0x20] sm:$0xff]
      %v426 = vld [vmem:[%s420 + $0x28] sm:$0xff]
      %v427 = vld [vmem:[%s420 + $0x30] sm:$0xff]
      %v428 = vld [vmem:[%s420 + $0x38] sm:$0xff]
      %v429 = vld [vmem:[%s420 + $0x40] sm:$0xff]
      %v430 = vld [vmem:[%s420 + $0x48] sm:$0xff]
      %v431 = vld [vmem:[%s420 + $0x50] sm:$0xff]
      %v432 = vld [vmem:[%s420 + $0x58] sm:$0xff]
      %v433 = vld [vmem:[%s420 + $0x60] sm:$0xff]
      %v434 = vld [vmem:[%s420 + $0x68] sm:$0xff]
      %v435 = vld [vmem:[%s420 + $0x70] sm:$0xff]
      %v436 = vld [vmem:[%s420 + $0x78] sm:$0xff]
      %v437 = vld [vmem:[%s420 + $0x80] sm:$0xff]
      %v438 = vld [vmem:[%s420 + $0x88] sm:$0xff]
      %v439 = vld [vmem:[%s420 + $0x90] sm:$0xff]
      %v440 = vld [vmem:[%s420 + $0x98] sm:$0xff]
      %v441 = vld [vmem:[%s420 + $0xa0] sm:$0xff]
      %v442 = vld [vmem:[%s420 + $0xa8] sm:$0xff]
      %v443 = vld [vmem:[%s420 + $0xb0] sm:$0xff]
      %v444 = vld [vmem:[%s420 + $0xb8] sm:$0xff]
      %v445 = vld [vmem:[%s420 + $0xc0] sm:$0xff]
      %v446 = vld [vmem:[%s420 + $0xc8] sm:$0xff]
      %v447 = vld [vmem:[%s420 + $0xd0] sm:$0xff]
      %v448 = vld [vmem:[%s420 + $0xd8] sm:$0xff]
      %v449 = vld [vmem:[%s420 + $0xe0] sm:$0xff]
      %v450 = vld [vmem:[%s420 + $0xe8] sm:$0xff]
      %v451 = vld [vmem:[%s420 + $0xf0] sm:$0xff]
      %v452 = vld [vmem:[%s420 + $0xf8] sm:$0xff]
      %v485 = vunpack.c.l.b16 %v421
      %v486 = vunpack.c.h.b16 %v421
      %v487 = vunpack.c.l.b16 %v422
      %v488 = vunpack.c.h.b16 %v422
      %v489 = vunpack.c.l.b16 %v423
      %v490 = vunpack.c.h.b16 %v423
      %v491 = vunpack.c.l.b16 %v424
      %v492 = vunpack.c.h.b16 %v424
      %v493 = vunpack.c.l.b16 %v425
      %v494 = vunpack.c.h.b16 %v425
      %v495 = vunpack.c.l.b16 %v426
      %v496 = vunpack.c.h.b16 %v426
      %v497 = vunpack.c.l.b16 %v427
      %v498 = vunpack.c.h.b16 %v427
      %v499 = vunpack.c.l.b16 %v428
      %v500 = vunpack.c.h.b16 %v428
      %v501 = vunpack.c.l.b16 %v429
      %v502 = vunpack.c.h.b16 %v429
      %v503 = vunpack.c.l.b16 %v430
      %v504 = vunpack.c.h.b16 %v430
      %v505 = vunpack.c.l.b16 %v431
      %v506 = vunpack.c.h.b16 %v431
      %v507 = vunpack.c.l.b16 %v432
      %v508 = vunpack.c.h.b16 %v432
      %v509 = vunpack.c.l.b16 %v433
      %v510 = vunpack.c.h.b16 %v433
      %v511 = vunpack.c.l.b16 %v434
      %v512 = vunpack.c.h.b16 %v434
      %v513 = vunpack.c.l.b16 %v435
      %v514 = vunpack.c.h.b16 %v435
      %v515 = vunpack.c.l.b16 %v436
      %v516 = vunpack.c.h.b16 %v436
      %v517 = vunpack.c.l.b16 %v437
      %v518 = vunpack.c.h.b16 %v437
      %v519 = vunpack.c.l.b16 %v438
      %v520 = vunpack.c.h.b16 %v438
      %v521 = vunpack.c.l.b16 %v439
      %v522 = vunpack.c.h.b16 %v439
      %v523 = vunpack.c.l.b16 %v440
      %v524 = vunpack.c.h.b16 %v440
      %v525 = vunpack.c.l.b16 %v441
      %v526 = vunpack.c.h.b16 %v441
      %v527 = vunpack.c.l.b16 %v442
      %v528 = vunpack.c.h.b16 %v442
      %v529 = vunpack.c.l.b16 %v443
      %v530 = vunpack.c.h.b16 %v443
      %v531 = vunpack.c.l.b16 %v444
      %v532 = vunpack.c.h.b16 %v444
      %v533 = vunpack.c.l.b16 %v445
      %v534 = vunpack.c.h.b16 %v445
      %v535 = vunpack.c.l.b16 %v446
      %v536 = vunpack.c.h.b16 %v446
      %v537 = vunpack.c.l.b16 %v447
      %v538 = vunpack.c.h.b16 %v447
      %v539 = vunpack.c.l.b16 %v448
      %v540 = vunpack.c.h.b16 %v448
      %v541 = vunpack.c.l.b16 %v449
      %v542 = vunpack.c.h.b16 %v449
      %v543 = vunpack.c.l.b16 %v450
      %v544 = vunpack.c.h.b16 %v450
      %v545 = vunpack.c.l.b16 %v451
      %v546 = vunpack.c.h.b16 %v451
      %v547 = vunpack.c.l.b16 %v452
      %v548 = vunpack.c.h.b16 %v452
      %v549 = vpack.c.b16 %v489, %v485
      %v550 = vpack.c.b16 %v490, %v486
      %v551 = vpack.c.b16 %v491, %v487
      %v552 = vpack.c.b16 %v492, %v488
      %v553 = vpack.c.b16 %v497, %v493
      %v554 = vpack.c.b16 %v498, %v494
      %v555 = vpack.c.b16 %v499, %v495
      %v556 = vpack.c.b16 %v500, %v496
      %v557 = vpack.c.b16 %v505, %v501
      %v558 = vpack.c.b16 %v506, %v502
      %v559 = vpack.c.b16 %v507, %v503
      %v560 = vpack.c.b16 %v508, %v504
      %v561 = vpack.c.b16 %v513, %v509
      %v562 = vpack.c.b16 %v514, %v510
      %v563 = vpack.c.b16 %v515, %v511
      %v564 = vpack.c.b16 %v516, %v512
      %v565 = vpack.c.b16 %v521, %v517
      %v566 = vpack.c.b16 %v522, %v518
      %v567 = vpack.c.b16 %v523, %v519
      %v568 = vpack.c.b16 %v524, %v520
      %v569 = vpack.c.b16 %v529, %v525
      %v570 = vpack.c.b16 %v530, %v526
      %v571 = vpack.c.b16 %v531, %v527
      %v572 = vpack.c.b16 %v532, %v528
      %v573 = vpack.c.b16 %v537, %v533
      %v574 = vpack.c.b16 %v538, %v534
      %v575 = vpack.c.b16 %v539, %v535
      %v576 = vpack.c.b16 %v540, %v536
      %v577 = vpack.c.b16 %v545, %v541
      %v578 = vpack.c.b16 %v546, %v542
      %v579 = vpack.c.b16 %v547, %v543
      %v580 = vpack.c.b16 %v548, %v544
      %613 = vmatprep.subr.bf16.mxu0 %v550
      %614 = vmatpush1.bf16.msra.mxu0 %v549
      %615 = vmatprep.subr.bf16.mxu0 %v554
      %616 = vmatpush1.bf16.msra.mxu0 %v553
      %617 = vmatprep.subr.bf16.mxu0 %v558
      %618 = vmatpush1.bf16.msra.mxu0 %v557
      %619 = vmatprep.subr.bf16.mxu0 %v562
      %620 = vmatpush1.bf16.msra.mxu0 %v561
      %621 = vmatprep.subr.bf16.mxu0 %v566
      %622 = vmatpush1.bf16.msra.mxu0 %v565
      %623 = vmatprep.subr.bf16.mxu0 %v570
      %624 = vmatpush1.bf16.msra.mxu0 %v569
      %625 = vmatprep.subr.bf16.mxu0 %v574
      %626 = vmatpush1.bf16.msra.mxu0 %v573
      %627 = vmatprep.subr.bf16.mxu0 %v578
      %628 = vmatpush1.bf16.msra.mxu0 %v577
      %629 = vmatprep.subr.bf16.mxu0 0
      %630 = vmatpush1.bf16.msra.mxu0 0
      %631 = vmatprep.subr.bf16.mxu0 0
      %632 = vmatpush1.bf16.msra.mxu0 0
      %633 = vmatprep.subr.bf16.mxu0 0
      %634 = vmatpush1.bf16.msra.mxu0 0
      %635 = vmatprep.subr.bf16.mxu0 0
      %636 = vmatpush1.bf16.msra.mxu0 0
      %637 = vmatprep.subr.bf16.mxu0 0
      %638 = vmatpush1.bf16.msra.mxu0 0
      %639 = vmatprep.subr.bf16.mxu0 0
      %640 = vmatpush1.bf16.msra.mxu0 0
      %641 = vmatprep.subr.bf16.mxu0 0
      %642 = vmatpush1.bf16.msra.mxu0 0
      %643 = vmatprep.subr.bf16.mxu0 0
      %644 = vmatpush1.bf16.msra.mxu0 0
      %645 = vmatprep.mubr.bf16.mxu0 0
      %646 = vmatmul.mubr.bf16.gmra.mrb[0].mxu0 %v419
      %v647 = vpop.f32.mrb[0].mxu0
      %v648 = vadd.f32 0.0, %v647
      %v649 = vpop.f32.mrb[0].mxu0
      %v650 = vadd.f32 0.0, %v649
      %v651 = vpop.f32.mrb[0].mxu0
      %v652 = vadd.f32 0.0, %v651
      %v653 = vpop.f32.mrb[0].mxu0
      %v654 = vadd.f32 0.0, %v653
      %655 = vdwg.mxu0
      %656 = vmatprep.subr.bf16.mxu0 %v552
      %657 = vmatpush1.bf16.msra.mxu0 %v551
      %658 = vmatprep.subr.bf16.mxu0 %v556
      %659 = vmatpush1.bf16.msra.mxu0 %v555
      %660 = vmatprep.subr.bf16.mxu0 %v560
      %661 = vmatpush1.bf16.msra.mxu0 %v559
      %662 = vmatprep.subr.bf16.mxu0 %v564
      %663 = vmatpush1.bf16.msra.mxu0 %v563
      %664 = vmatprep.subr.bf16.mxu0 %v568
      %665 = vmatpush1.bf16.msra.mxu0 %v567
      %666 = vmatprep.subr.bf16.mxu0 %v572
      %667 = vmatpush1.bf16.msra.mxu0 %v571
      %668 = vmatprep.subr.bf16.mxu0 %v576
      %669 = vmatpush1.bf16.msra.mxu0 %v575
      %670 = vmatprep.subr.bf16.mxu0 %v580
      %671 = vmatpush1.bf16.msra.mxu0 %v579
      %672 = vmatprep.subr.bf16.mxu0 0
      %673 = vmatpush1.bf16.msra.mxu0 0
      %674 = vmatprep.subr.bf16.mxu0 0
      %675 = vmatpush1.bf16.msra.mxu0 0
      %676 = vmatprep.subr.bf16.mxu0 0
      %677 = vmatpush1.bf16.msra.mxu0 0
      %678 = vmatprep.subr.bf16.mxu0 0
      %679 = vmatpush1.bf16.msra.mxu0 0
      %680 = vmatprep.subr.bf16.mxu0 0
      %681 = vmatpush1.bf16.msra.mxu0 0
      %682 = vmatprep.subr.bf16.mxu0 0
      %683 = vmatpush1.bf16.msra.mxu0 0
      %684 = vmatprep.subr.bf16.mxu0 0
      %685 = vmatpush1.bf16.msra.mxu0 0
      %686 = vmatprep.subr.bf16.mxu0 0
      %687 = vmatpush1.bf16.msra.mxu0 0
      %688 = vmatprep.mubr.bf16.mxu0 0
      %689 = vmatmul.mubr.bf16.gmra.mrb[0].mxu0 %v419
      %v690 = vpop.f32.mrb[0].mxu0
      %v691 = vadd.f32 0.0, %v690
      %v692 = vpop.f32.mrb[0].mxu0
      %v693 = vadd.f32 0.0, %v692
      %v694 = vpop.f32.mrb[0].mxu0
      %v695 = vadd.f32 0.0, %v694
      %v696 = vpop.f32.mrb[0].mxu0
      %v697 = vadd.f32 0.0, %v696
      %698 = vdwg.mxu0
      %v699 = vadd.f32 %v411, %v648
      %v700 = vadd.f32 %v412, %v650
      %v701 = vadd.f32 %v413, %v691
      %v702 = vadd.f32 %v414, %v693
      %v703 = vadd.f32 %v415, %v652
      %v704 = vadd.f32 %v416, %v654
      %v705 = vadd.f32 %v417, %v695
      %v706 = vadd.f32 %v418, %v697
      %v707 = vxor.u32 %v397, 2147483648
      %v708 = vxor.u32 %v398, 2147483648
      %v709 = vxor.u32 %v399, 2147483648
      %v710 = vxor.u32 %v401, 2147483648
      %v711 = vxor.u32 %v402, 2147483648
      %v712 = vxor.u32 %v403, 2147483648
      %v713 = vmul.f32 %v707, 1.442695
      %v714 = vpow.pop %v713
      %v715 = vmul.f32 %v708, 1.442695
      %v716 = vpow.pop %v715
      %v717 = vmul.f32 %v709, 1.442695
      %v718 = vpow.pop %v717
      %v719 = vmul.f32 %v710, 1.442695
      %v720 = vpow.pop %v719
      %v721 = vmul.f32 %v711, 1.442695
      %v722 = vpow.pop %v721
      %v723 = vmul.f32 %v712, 1.442695
      %v724 = vpow.pop %v723
      %v725 = vadd.f32 %v714, 1.0
      %v726 = vadd.f32 %v716, 1.0
      %v727 = vadd.f32 %v718, 1.0
      %v728 = vadd.f32 %v720, 1.0
      %v729 = vadd.f32 %v722, 1.0
      %v730 = vadd.f32 %v724, 1.0
      %v731 = vrcp.pop %v725
      %v732 = vmul.f32 1.0, %v731
      %v733 = vrcp.pop %v726
      %v734 = vmul.f32 1.0, %v733
      %v735 = vrcp.pop %v727
      %v736 = vmul.f32 1.0, %v735
      %v737 = vrcp.pop %v728
      %v738 = vmul.f32 1.0, %v737
      %v739 = vrcp.pop %v729
      %v740 = vmul.f32 1.0, %v739
      %v741 = vrcp.pop %v730
      %v742 = vmul.f32 1.0, %v741
      %v743 = vtanh.pop %v400
      %v744 = vtanh.pop %v404
      %v745 = vmul.f32 %v734, %v97
      %v746 = vmul.f32 %v740, %v98
      %v747 = vmul.f32 %v732, %v743
      %v748 = vmul.f32 %v738, %v744
      %v749 = vadd.f32 %v745, %v747
      %v750 = vadd.f32 %v746, %v748
      %v751 = vtanh.pop %v749
      %v752 = vtanh.pop %v750
      %v753 = vmul.f32 %v736, %v751
      %v754 = vmul.f32 %v742, %v752
      %v755 = vsel %vm89, 1, 0
      %v756 = vsel %vm90, 1, 0
      %757 = vset.pattern.permute.xlu0 0
      %758 = vperm.xlu0 %757, %v755
      %v759 = vpop.permute.xlu0 %758
      %760 = vset.pattern.permute.xlu0 0
      %761 = vperm.xlu0 %760, %v756
      %v762 = vpop.permute.xlu0 %761
      %vm763 = vcmp.eq.s32.totalorder %v759, 1
      %vm764 = vcmp.eq.s32.totalorder %v762, 1
      %v765 = vsel %vm763, %v749, %v97
      %v766 = vsel %vm764, %v750, %v98
      %v767 = vsel %vm763, %v753, %v95
      %v768 = vsel %vm764, %v754, %v96
      %v769 = vxor.u32 %v699, 2147483648
      %v770 = vxor.u32 %v700, 2147483648
      %v771 = vxor.u32 %v701, 2147483648
      %v772 = vxor.u32 %v703, 2147483648
      %v773 = vxor.u32 %v704, 2147483648
      %v774 = vxor.u32 %v705, 2147483648
      %v775 = vmul.f32 %v769, 1.442695
      %v776 = vpow.pop %v775
      %v777 = vmul.f32 %v770, 1.442695
      %v778 = vpow.pop %v777
      %v779 = vmul.f32 %v771, 1.442695
      %v780 = vpow.pop %v779
      %v781 = vmul.f32 %v772, 1.442695
      %v782 = vpow.pop %v781
      %v783 = vmul.f32 %v773, 1.442695
      %v784 = vpow.pop %v783
      %v785 = vmul.f32 %v774, 1.442695
      %v786 = vpow.pop %v785
      %v787 = vadd.f32 %v776, 1.0
      %v788 = vadd.f32 %v778, 1.0
      %v789 = vadd.f32 %v780, 1.0
      %v790 = vadd.f32 %v782, 1.0
      %v791 = vadd.f32 %v784, 1.0
      %v792 = vadd.f32 %v786, 1.0
      %v793 = vrcp.pop %v787
      %v794 = vmul.f32 1.0, %v793
      %v795 = vrcp.pop %v788
      %v796 = vmul.f32 1.0, %v795
      %v797 = vrcp.pop %v789
      %v798 = vmul.f32 1.0, %v797
      %v799 = vrcp.pop %v790
      %v800 = vmul.f32 1.0, %v799
      %v801 = vrcp.pop %v791
      %v802 = vmul.f32 1.0, %v801
      %v803 = vrcp.pop %v792
      %v804 = vmul.f32 1.0, %v803
      %v805 = vtanh.pop %v702
      %v806 = vtanh.pop %v706
      %v807 = vmul.f32 %v796, %v101
      %v808 = vmul.f32 %v802, %v102
      %v809 = vmul.f32 %v794, %v805
      %v810 = vmul.f32 %v800, %v806
      %v811 = vadd.f32 %v807, %v809
      %v812 = vadd.f32 %v808, %v810
      %v813 = vtanh.pop %v811
      %v814 = vtanh.pop %v812
      %v815 = vmul.f32 %v798, %v813
      %v816 = vmul.f32 %v804, %v814
      %v817 = vsel %vm93, 1, 0
      %v818 = vsel %vm94, 1, 0
      %819 = vset.pattern.permute.xlu0 0
      %820 = vperm.xlu0 %819, %v817
      %v821 = vpop.permute.xlu0 %820
      %822 = vset.pattern.permute.xlu0 0
      %823 = vperm.xlu0 %822, %v818
      %v824 = vpop.permute.xlu0 %823
      %vm825 = vcmp.eq.s32.totalorder %v821, 1
      %vm826 = vcmp.eq.s32.totalorder %v824, 1
      %v827 = vsel %vm825, %v811, %v101
      %v828 = vsel %vm826, %v812, %v102
      %v829 = vsel %vm825, %v815, %v99
      %v830 = vsel %vm826, %v816, %v100
      %831 = vst [vmem:[#allocation2] sm:$0xff] %v767
      %832 = vst [vmem:[#allocation2 + $0x8] sm:$0xff] %v768
      %833 = vst [vmem:[#allocation3] sm:$0xff] %v765
      %834 = vst [vmem:[#allocation3 + $0x8] sm:$0xff] %v766
      %835 = vst [vmem:[#allocation4] sm:$0xff] %v829
      %836 = vst [vmem:[#allocation4 + $0x8] sm:$0xff] %v830
      %837 = vst [vmem:[#allocation5] sm:$0xff] %v827
      %838 = vst [vmem:[#allocation5 + $0x8] sm:$0xff] %v828
      %v839 = vsel %vm763, %v753, 0.0
      %v840 = vsel %vm764, %v754, 0.0
      %s841 = smul.u32 %s85, 16
      %s842 = scalar_lea.vmem [#allocation12], %s841
      %843 = vst [vmem:[%s842] sm:$0xff] %v839
      %844 = vst [vmem:[%s842 + $0x8] sm:$0xff] %v840
      %v845 = vsel %vm825, %v815, 0.0
      %v846 = vsel %vm826, %v816, 0.0
      %s847 = scalar_lea.vmem [#allocation13], %s841
      %848 = vst [vmem:[%s847] sm:$0xff] %v845
      %849 = vst [vmem:[%s847 + $0x8] sm:$0xff] %v846
      %s850 = sadd.s32 %s85, 1
      %s851 = scvt.s32.f32 %s850
      %s852 = sadd.f32 %s78, %s851
      %v853 = vstv %s852
      %vm854 = vcmp.gt.f32.partialorder %v75, %v853
      %vm855 = vcmp.gt.f32.partialorder %v76, %v853
      %s856 = ssub.f32 7.0, %s852
      %v857 = vstv %s856
      %vm858 = vcmp.gt.f32.partialorder %v75, %v857
      %vm859 = vcmp.gt.f32.partialorder %v76, %v857
      %v860 = vld [vmem:[#allocation2] sm:$0xff]
      %v861 = vld [vmem:[#allocation2 + $0x8] sm:$0xff]
      %v862 = vld [vmem:[#allocation3] sm:$0xff]
      %v863 = vld [vmem:[#allocation3 + $0x8] sm:$0xff]
      %v864 = vld [vmem:[#allocation4] sm:$0xff]
      %v865 = vld [vmem:[#allocation4 + $0x8] sm:$0xff]
      %v866 = vld [vmem:[#allocation5] sm:$0xff]
      %v867 = vld [vmem:[#allocation5 + $0x8] sm:$0xff]
      %s868 = smul.u32 %s850, 8
      %s869 = smul.addr %s868, 4
      %s870 = scalar_lea.vmem [#allocation6], %s869
      %v871 = vld [vmem:[%s870] sm:$0xff]
      %v872 = vld [vmem:[%s870 + $0x8] sm:$0xff]
      %v873 = vld [vmem:[%s870 + $0x10] sm:$0xff]
      %v874 = vld [vmem:[%s870 + $0x18] sm:$0xff]
      %v875 = vunpack.c.l.bf16 %v871
      %v876 = vunpack.c.h.bf16 %v871
      %v877 = vunpack.c.l.bf16 %v872
      %v878 = vunpack.c.h.bf16 %v872
      %v879 = vunpack.c.l.bf16 %v873
      %v880 = vunpack.c.h.bf16 %v873
      %v881 = vunpack.c.l.bf16 %v874
      %v882 = vunpack.c.h.bf16 %v874
      %v883 = vpack.c.bf16 %v861, %v860
      %v884 = vld [vmem:[#allocation11] sm:$0xff]
      %v885 = vld [vmem:[#allocation11 + $0x8] sm:$0xff]
      %v886 = vld [vmem:[#allocation11 + $0x10] sm:$0xff]
      %v887 = vld [vmem:[#allocation11 + $0x18] sm:$0xff]
      %v888 = vld [vmem:[#allocation11 + $0x20] sm:$0xff]
      %v889 = vld [vmem:[#allocation11 + $0x28] sm:$0xff]
      %v890 = vld [vmem:[#allocation11 + $0x30] sm:$0xff]
      %v891 = vld [vmem:[#allocation11 + $0x38] sm:$0xff]
      %v892 = vld [vmem:[#allocation11 + $0x40] sm:$0xff]
      %v893 = vld [vmem:[#allocation11 + $0x48] sm:$0xff]
      %v894 = vld [vmem:[#allocation11 + $0x50] sm:$0xff]
      %v895 = vld [vmem:[#allocation11 + $0x58] sm:$0xff]
      %v896 = vld [vmem:[#allocation11 + $0x60] sm:$0xff]
      %v897 = vld [vmem:[#allocation11 + $0x68] sm:$0xff]
      %v898 = vld [vmem:[#allocation11 + $0x70] sm:$0xff]
      %v899 = vld [vmem:[#allocation11 + $0x78] sm:$0xff]
      %v900 = vld [vmem:[#allocation11 + $0x80] sm:$0xff]
      %v901 = vld [vmem:[#allocation11 + $0x88] sm:$0xff]
      %v902 = vld [vmem:[#allocation11 + $0x90] sm:$0xff]
      %v903 = vld [vmem:[#allocation11 + $0x98] sm:$0xff]
      %v904 = vld [vmem:[#allocation11 + $0xa0] sm:$0xff]
      %v905 = vld [vmem:[#allocation11 + $0xa8] sm:$0xff]
      %v906 = vld [vmem:[#allocation11 + $0xb0] sm:$0xff]
      %v907 = vld [vmem:[#allocation11 + $0xb8] sm:$0xff]
      %v908 = vld [vmem:[#allocation11 + $0xc0] sm:$0xff]
      %v909 = vld [vmem:[#allocation11 + $0xc8] sm:$0xff]
      %v910 = vld [vmem:[#allocation11 + $0xd0] sm:$0xff]
      %v911 = vld [vmem:[#allocation11 + $0xd8] sm:$0xff]
      %v912 = vld [vmem:[#allocation11 + $0xe0] sm:$0xff]
      %v913 = vld [vmem:[#allocation11 + $0xe8] sm:$0xff]
      %v914 = vld [vmem:[#allocation11 + $0xf0] sm:$0xff]
      %v915 = vld [vmem:[#allocation11 + $0xf8] sm:$0xff]
      %v948 = vunpack.c.l.b16 %v884
      %v949 = vunpack.c.h.b16 %v884
      %v950 = vunpack.c.l.b16 %v885
      %v951 = vunpack.c.h.b16 %v885
      %v952 = vunpack.c.l.b16 %v886
      %v953 = vunpack.c.h.b16 %v886
      %v954 = vunpack.c.l.b16 %v887
      %v955 = vunpack.c.h.b16 %v887
      %v956 = vunpack.c.l.b16 %v888
      %v957 = vunpack.c.h.b16 %v888
      %v958 = vunpack.c.l.b16 %v889
      %v959 = vunpack.c.h.b16 %v889
      %v960 = vunpack.c.l.b16 %v890
      %v961 = vunpack.c.h.b16 %v890
      %v962 = vunpack.c.l.b16 %v891
      %v963 = vunpack.c.h.b16 %v891
      %v964 = vunpack.c.l.b16 %v892
      %v965 = vunpack.c.h.b16 %v892
      %v966 = vunpack.c.l.b16 %v893
      %v967 = vunpack.c.h.b16 %v893
      %v968 = vunpack.c.l.b16 %v894
      %v969 = vunpack.c.h.b16 %v894
      %v970 = vunpack.c.l.b16 %v895
      %v971 = vunpack.c.h.b16 %v895
      %v972 = vunpack.c.l.b16 %v896
      %v973 = vunpack.c.h.b16 %v896
      %v974 = vunpack.c.l.b16 %v897
      %v975 = vunpack.c.h.b16 %v897
      %v976 = vunpack.c.l.b16 %v898
      %v977 = vunpack.c.h.b16 %v898
      %v978 = vunpack.c.l.b16 %v899
      %v979 = vunpack.c.h.b16 %v899
      %v980 = vunpack.c.l.b16 %v900
      %v981 = vunpack.c.h.b16 %v900
      %v982 = vunpack.c.l.b16 %v901
      %v983 = vunpack.c.h.b16 %v901
      %v984 = vunpack.c.l.b16 %v902
      %v985 = vunpack.c.h.b16 %v902
      %v986 = vunpack.c.l.b16 %v903
      %v987 = vunpack.c.h.b16 %v903
      %v988 = vunpack.c.l.b16 %v904
      %v989 = vunpack.c.h.b16 %v904
      %v990 = vunpack.c.l.b16 %v905
      %v991 = vunpack.c.h.b16 %v905
      %v992 = vunpack.c.l.b16 %v906
      %v993 = vunpack.c.h.b16 %v906
      %v994 = vunpack.c.l.b16 %v907
      %v995 = vunpack.c.h.b16 %v907
      %v996 = vunpack.c.l.b16 %v908
      %v997 = vunpack.c.h.b16 %v908
      %v998 = vunpack.c.l.b16 %v909
      %v999 = vunpack.c.h.b16 %v909
      %v1000 = vunpack.c.l.b16 %v910
      %v1001 = vunpack.c.h.b16 %v910
      %v1002 = vunpack.c.l.b16 %v911
      %v1003 = vunpack.c.h.b16 %v911
      %v1004 = vunpack.c.l.b16 %v912
      %v1005 = vunpack.c.h.b16 %v912
      %v1006 = vunpack.c.l.b16 %v913
      %v1007 = vunpack.c.h.b16 %v913
      %v1008 = vunpack.c.l.b16 %v914
      %v1009 = vunpack.c.h.b16 %v914
      %v1010 = vunpack.c.l.b16 %v915
      %v1011 = vunpack.c.h.b16 %v915
      %v1012 = vpack.c.b16 %v952, %v948
      %v1013 = vpack.c.b16 %v953, %v949
      %v1014 = vpack.c.b16 %v954, %v950
      %v1015 = vpack.c.b16 %v955, %v951
      %v1016 = vpack.c.b16 %v960, %v956
      %v1017 = vpack.c.b16 %v961, %v957
      %v1018 = vpack.c.b16 %v962, %v958
      %v1019 = vpack.c.b16 %v963, %v959
      %v1020 = vpack.c.b16 %v968, %v964
      %v1021 = vpack.c.b16 %v969, %v965
      %v1022 = vpack.c.b16 %v970, %v966
      %v1023 = vpack.c.b16 %v971, %v967
      %v1024 = vpack.c.b16 %v976, %v972
      %v1025 = vpack.c.b16 %v977, %v973
      %v1026 = vpack.c.b16 %v978, %v974
      %v1027 = vpack.c.b16 %v979, %v975
      %v1028 = vpack.c.b16 %v984, %v980
      %v1029 = vpack.c.b16 %v985, %v981
      %v1030 = vpack.c.b16 %v986, %v982
      %v1031 = vpack.c.b16 %v987, %v983
      %v1032 = vpack.c.b16 %v992, %v988
      %v1033 = vpack.c.b16 %v993, %v989
      %v1034 = vpack.c.b16 %v994, %v990
      %v1035 = vpack.c.b16 %v995, %v991
      %v1036 = vpack.c.b16 %v1000, %v996
      %v1037 = vpack.c.b16 %v1001, %v997
      %v1038 = vpack.c.b16 %v1002, %v998
      %v1039 = vpack.c.b16 %v1003, %v999
      %v1040 = vpack.c.b16 %v1008, %v1004
      %v1041 = vpack.c.b16 %v1009, %v1005
      %v1042 = vpack.c.b16 %v1010, %v1006
      %v1043 = vpack.c.b16 %v1011, %v1007
      %1076 = vmatprep.subr.bf16.mxu0 %v1013
      %1077 = vmatpush1.bf16.msra.mxu0 %v1012
      %1078 = vmatprep.subr.bf16.mxu0 %v1017
      %1079 = vmatpush1.bf16.msra.mxu0 %v1016
      %1080 = vmatprep.subr.bf16.mxu0 %v1021
      %1081 = vmatpush1.bf16.msra.mxu0 %v1020
      %1082 = vmatprep.subr.bf16.mxu0 %v1025
      %1083 = vmatpush1.bf16.msra.mxu0 %v1024
      %1084 = vmatprep.subr.bf16.mxu0 %v1029
      %1085 = vmatpush1.bf16.msra.mxu0 %v1028
      %1086 = vmatprep.subr.bf16.mxu0 %v1033
      %1087 = vmatpush1.bf16.msra.mxu0 %v1032
      %1088 = vmatprep.subr.bf16.mxu0 %v1037
      %1089 = vmatpush1.bf16.msra.mxu0 %v1036
      %1090 = vmatprep.subr.bf16.mxu0 %v1041
      %1091 = vmatpush1.bf16.msra.mxu0 %v1040
      %1092 = vmatprep.subr.bf16.mxu0 0
      %1093 = vmatpush1.bf16.msra.mxu0 0
      %1094 = vmatprep.subr.bf16.mxu0 0
      %1095 = vmatpush1.bf16.msra.mxu0 0
      %1096 = vmatprep.subr.bf16.mxu0 0
      %1097 = vmatpush1.bf16.msra.mxu0 0
      %1098 = vmatprep.subr.bf16.mxu0 0
      %1099 = vmatpush1.bf16.msra.mxu0 0
      %1100 = vmatprep.subr.bf16.mxu0 0
      %1101 = vmatpush1.bf16.msra.mxu0 0
      %1102 = vmatprep.subr.bf16.mxu0 0
      %1103 = vmatpush1.bf16.msra.mxu0 0
      %1104 = vmatprep.subr.bf16.mxu0 0
      %1105 = vmatpush1.bf16.msra.mxu0 0
      %1106 = vmatprep.subr.bf16.mxu0 0
      %1107 = vmatpush1.bf16.msra.mxu0 0
      %1108 = vmatprep.mubr.bf16.mxu0 0
      %1109 = vmatmul.mubr.bf16.gmra.mrb[0].mxu0 %v883
      %v1110 = vpop.f32.mrb[0].mxu0
      %v1111 = vadd.f32 0.0, %v1110
      %v1112 = vpop.f32.mrb[0].mxu0
      %v1113 = vadd.f32 0.0, %v1112
      %v1114 = vpop.f32.mrb[0].mxu0
      %v1115 = vadd.f32 0.0, %v1114
      %v1116 = vpop.f32.mrb[0].mxu0
      %v1117 = vadd.f32 0.0, %v1116
      %1118 = vdwg.mxu0
      %1119 = vmatprep.subr.bf16.mxu0 %v1015
      %1120 = vmatpush1.bf16.msra.mxu0 %v1014
      %1121 = vmatprep.subr.bf16.mxu0 %v1019
      %1122 = vmatpush1.bf16.msra.mxu0 %v1018
      %1123 = vmatprep.subr.bf16.mxu0 %v1023
      %1124 = vmatpush1.bf16.msra.mxu0 %v1022
      %1125 = vmatprep.subr.bf16.mxu0 %v1027
      %1126 = vmatpush1.bf16.msra.mxu0 %v1026
      %1127 = vmatprep.subr.bf16.mxu0 %v1031
      %1128 = vmatpush1.bf16.msra.mxu0 %v1030
      %1129 = vmatprep.subr.bf16.mxu0 %v1035
      %1130 = vmatpush1.bf16.msra.mxu0 %v1034
      %1131 = vmatprep.subr.bf16.mxu0 %v1039
      %1132 = vmatpush1.bf16.msra.mxu0 %v1038
      %1133 = vmatprep.subr.bf16.mxu0 %v1043
      %1134 = vmatpush1.bf16.msra.mxu0 %v1042
      %1135 = vmatprep.subr.bf16.mxu0 0
      %1136 = vmatpush1.bf16.msra.mxu0 0
      %1137 = vmatprep.subr.bf16.mxu0 0
      %1138 = vmatpush1.bf16.msra.mxu0 0
      %1139 = vmatprep.subr.bf16.mxu0 0
      %1140 = vmatpush1.bf16.msra.mxu0 0
      %1141 = vmatprep.subr.bf16.mxu0 0
      %1142 = vmatpush1.bf16.msra.mxu0 0
      %1143 = vmatprep.subr.bf16.mxu0 0
      %1144 = vmatpush1.bf16.msra.mxu0 0
      %1145 = vmatprep.subr.bf16.mxu0 0
      %1146 = vmatpush1.bf16.msra.mxu0 0
      %1147 = vmatprep.subr.bf16.mxu0 0
      %1148 = vmatpush1.bf16.msra.mxu0 0
      %1149 = vmatprep.subr.bf16.mxu0 0
      %1150 = vmatpush1.bf16.msra.mxu0 0
      %1151 = vmatprep.mubr.bf16.mxu0 0
      %1152 = vmatmul.mubr.bf16.gmra.mrb[0].mxu0 %v883
      %v1153 = vpop.f32.mrb[0].mxu0
      %v1154 = vadd.f32 0.0, %v1153
      %v1155 = vpop.f32.mrb[0].mxu0
      %v1156 = vadd.f32 0.0, %v1155
      %v1157 = vpop.f32.mrb[0].mxu0
      %v1158 = vadd.f32 0.0, %v1157
      %v1159 = vpop.f32.mrb[0].mxu0
      %v1160 = vadd.f32 0.0, %v1159
      %1161 = vdwg.mxu0
      %v1162 = vadd.f32 %v875, %v1111
      %v1163 = vadd.f32 %v876, %v1113
      %v1164 = vadd.f32 %v877, %v1154
      %v1165 = vadd.f32 %v878, %v1156
      %v1166 = vadd.f32 %v879, %v1115
      %v1167 = vadd.f32 %v880, %v1117
      %v1168 = vadd.f32 %v881, %v1158
      %v1169 = vadd.f32 %v882, %v1160
      %s1170 = smul.addr %s868, 4
      %s1171 = scalar_lea.vmem [#allocation9], %s1170
      %v1172 = vld [vmem:[%s1171] sm:$0xff]
      %v1173 = vld [vmem:[%s1171 + $0x8] sm:$0xff]
      %v1174 = vld [vmem:[%s1171 + $0x10] sm:$0xff]
      %v1175 = vld [vmem:[%s1171 + $0x18] sm:$0xff]
      %v1176 = vunpack.c.l.bf16 %v1172
      %v1177 = vunpack.c.h.bf16 %v1172
      %v1178 = vunpack.c.l.bf16 %v1173
      %v1179 = vunpack.c.h.bf16 %v1173
      %v1180 = vunpack.c.l.bf16 %v1174
      %v1181 = vunpack.c.h.bf16 %v1174
      %v1182 = vunpack.c.l.bf16 %v1175
      %v1183 = vunpack.c.h.bf16 %v1175
      %v1184 = vpack.c.bf16 %v865, %v864
      %v1185 = vld [vmem:[%s420] sm:$0xff]
      %v1186 = vld [vmem:[%s420 + $0x8] sm:$0xff]
      %v1187 = vld [vmem:[%s420 + $0x10] sm:$0xff]
      %v1188 = vld [vmem:[%s420 + $0x18] sm:$0xff]
      %v1189 = vld [vmem:[%s420 + $0x20] sm:$0xff]
      %v1190 = vld [vmem:[%s420 + $0x28] sm:$0xff]
      %v1191 = vld [vmem:[%s420 + $0x30] sm:$0xff]
      %v1192 = vld [vmem:[%s420 + $0x38] sm:$0xff]
      %v1193 = vld [vmem:[%s420 + $0x40] sm:$0xff]
      %v1194 = vld [vmem:[%s420 + $0x48] sm:$0xff]
      %v1195 = vld [vmem:[%s420 + $0x50] sm:$0xff]
      %v1196 = vld [vmem:[%s420 + $0x58] sm:$0xff]
      %v1197 = vld [vmem:[%s420 + $0x60] sm:$0xff]
      %v1198 = vld [vmem:[%s420 + $0x68] sm:$0xff]
      %v1199 = vld [vmem:[%s420 + $0x70] sm:$0xff]
      %v1200 = vld [vmem:[%s420 + $0x78] sm:$0xff]
      %v1201 = vld [vmem:[%s420 + $0x80] sm:$0xff]
      %v1202 = vld [vmem:[%s420 + $0x88] sm:$0xff]
      %v1203 = vld [vmem:[%s420 + $0x90] sm:$0xff]
      %v1204 = vld [vmem:[%s420 + $0x98] sm:$0xff]
      %v1205 = vld [vmem:[%s420 + $0xa0] sm:$0xff]
      %v1206 = vld [vmem:[%s420 + $0xa8] sm:$0xff]
      %v1207 = vld [vmem:[%s420 + $0xb0] sm:$0xff]
      %v1208 = vld [vmem:[%s420 + $0xb8] sm:$0xff]
      %v1209 = vld [vmem:[%s420 + $0xc0] sm:$0xff]
      %v1210 = vld [vmem:[%s420 + $0xc8] sm:$0xff]
      %v1211 = vld [vmem:[%s420 + $0xd0] sm:$0xff]
      %v1212 = vld [vmem:[%s420 + $0xd8] sm:$0xff]
      %v1213 = vld [vmem:[%s420 + $0xe0] sm:$0xff]
      %v1214 = vld [vmem:[%s420 + $0xe8] sm:$0xff]
      %v1215 = vld [vmem:[%s420 + $0xf0] sm:$0xff]
      %v1216 = vld [vmem:[%s420 + $0xf8] sm:$0xff]
      %v1249 = vunpack.c.l.b16 %v1185
      %v1250 = vunpack.c.h.b16 %v1185
      %v1251 = vunpack.c.l.b16 %v1186
      %v1252 = vunpack.c.h.b16 %v1186
      %v1253 = vunpack.c.l.b16 %v1187
      %v1254 = vunpack.c.h.b16 %v1187
      %v1255 = vunpack.c.l.b16 %v1188
      %v1256 = vunpack.c.h.b16 %v1188
      %v1257 = vunpack.c.l.b16 %v1189
      %v1258 = vunpack.c.h.b16 %v1189
      %v1259 = vunpack.c.l.b16 %v1190
      %v1260 = vunpack.c.h.b16 %v1190
      %v1261 = vunpack.c.l.b16 %v1191
      %v1262 = vunpack.c.h.b16 %v1191
      %v1263 = vunpack.c.l.b16 %v1192
      %v1264 = vunpack.c.h.b16 %v1192
      %v1265 = vunpack.c.l.b16 %v1193
      %v1266 = vunpack.c.h.b16 %v1193
      %v1267 = vunpack.c.l.b16 %v1194
      %v1268 = vunpack.c.h.b16 %v1194
      %v1269 = vunpack.c.l.b16 %v1195
      %v1270 = vunpack.c.h.b16 %v1195
      %v1271 = vunpack.c.l.b16 %v1196
      %v1272 = vunpack.c.h.b16 %v1196
      %v1273 = vunpack.c.l.b16 %v1197
      %v1274 = vunpack.c.h.b16 %v1197
      %v1275 = vunpack.c.l.b16 %v1198
      %v1276 = vunpack.c.h.b16 %v1198
      %v1277 = vunpack.c.l.b16 %v1199
      %v1278 = vunpack.c.h.b16 %v1199
      %v1279 = vunpack.c.l.b16 %v1200
      %v1280 = vunpack.c.h.b16 %v1200
      %v1281 = vunpack.c.l.b16 %v1201
      %v1282 = vunpack.c.h.b16 %v1201
      %v1283 = vunpack.c.l.b16 %v1202
      %v1284 = vunpack.c.h.b16 %v1202
      %v1285 = vunpack.c.l.b16 %v1203
      %v1286 = vunpack.c.h.b16 %v1203
      %v1287 = vunpack.c.l.b16 %v1204
      %v1288 = vunpack.c.h.b16 %v1204
      %v1289 = vunpack.c.l.b16 %v1205
      %v1290 = vunpack.c.h.b16 %v1205
      %v1291 = vunpack.c.l.b16 %v1206
      %v1292 = vunpack.c.h.b16 %v1206
      %v1293 = vunpack.c.l.b16 %v1207
      %v1294 = vunpack.c.h.b16 %v1207
      %v1295 = vunpack.c.l.b16 %v1208
      %v1296 = vunpack.c.h.b16 %v1208
      %v1297 = vunpack.c.l.b16 %v1209
      %v1298 = vunpack.c.h.b16 %v1209
      %v1299 = vunpack.c.l.b16 %v1210
      %v1300 = vunpack.c.h.b16 %v1210
      %v1301 = vunpack.c.l.b16 %v1211
      %v1302 = vunpack.c.h.b16 %v1211
      %v1303 = vunpack.c.l.b16 %v1212
      %v1304 = vunpack.c.h.b16 %v1212
      %v1305 = vunpack.c.l.b16 %v1213
      %v1306 = vunpack.c.h.b16 %v1213
      %v1307 = vunpack.c.l.b16 %v1214
      %v1308 = vunpack.c.h.b16 %v1214
      %v1309 = vunpack.c.l.b16 %v1215
      %v1310 = vunpack.c.h.b16 %v1215
      %v1311 = vunpack.c.l.b16 %v1216
      %v1312 = vunpack.c.h.b16 %v1216
      %v1313 = vpack.c.b16 %v1253, %v1249
      %v1314 = vpack.c.b16 %v1254, %v1250
      %v1315 = vpack.c.b16 %v1255, %v1251
      %v1316 = vpack.c.b16 %v1256, %v1252
      %v1317 = vpack.c.b16 %v1261, %v1257
      %v1318 = vpack.c.b16 %v1262, %v1258
      %v1319 = vpack.c.b16 %v1263, %v1259
      %v1320 = vpack.c.b16 %v1264, %v1260
      %v1321 = vpack.c.b16 %v1269, %v1265
      %v1322 = vpack.c.b16 %v1270, %v1266
      %v1323 = vpack.c.b16 %v1271, %v1267
      %v1324 = vpack.c.b16 %v1272, %v1268
      %v1325 = vpack.c.b16 %v1277, %v1273
      %v1326 = vpack.c.b16 %v1278, %v1274
      %v1327 = vpack.c.b16 %v1279, %v1275
      %v1328 = vpack.c.b16 %v1280, %v1276
      %v1329 = vpack.c.b16 %v1285, %v1281
      %v1330 = vpack.c.b16 %v1286, %v1282
      %v1331 = vpack.c.b16 %v1287, %v1283
      %v1332 = vpack.c.b16 %v1288, %v1284
      %v1333 = vpack.c.b16 %v1293, %v1289
      %v1334 = vpack.c.b16 %v1294, %v1290
      %v1335 = vpack.c.b16 %v1295, %v1291
      %v1336 = vpack.c.b16 %v1296, %v1292
      %v1337 = vpack.c.b16 %v1301, %v1297
      %v1338 = vpack.c.b16 %v1302, %v1298
      %v1339 = vpack.c.b16 %v1303, %v1299
      %v1340 = vpack.c.b16 %v1304, %v1300
      %v1341 = vpack.c.b16 %v1309, %v1305
      %v1342 = vpack.c.b16 %v1310, %v1306
      %v1343 = vpack.c.b16 %v1311, %v1307
      %v1344 = vpack.c.b16 %v1312, %v1308
      %1377 = vmatprep.subr.bf16.mxu0 %v1314
      %1378 = vmatpush1.bf16.msra.mxu0 %v1313
      %1379 = vmatprep.subr.bf16.mxu0 %v1318
      %1380 = vmatpush1.bf16.msra.mxu0 %v1317
      %1381 = vmatprep.subr.bf16.mxu0 %v1322
      %1382 = vmatpush1.bf16.msra.mxu0 %v1321
      %1383 = vmatprep.subr.bf16.mxu0 %v1326
      %1384 = vmatpush1.bf16.msra.mxu0 %v1325
      %1385 = vmatprep.subr.bf16.mxu0 %v1330
      %1386 = vmatpush1.bf16.msra.mxu0 %v1329
      %1387 = vmatprep.subr.bf16.mxu0 %v1334
      %1388 = vmatpush1.bf16.msra.mxu0 %v1333
      %1389 = vmatprep.subr.bf16.mxu0 %v1338
      %1390 = vmatpush1.bf16.msra.mxu0 %v1337
      %1391 = vmatprep.subr.bf16.mxu0 %v1342
      %1392 = vmatpush1.bf16.msra.mxu0 %v1341
      %1393 = vmatprep.subr.bf16.mxu0 0
      %1394 = vmatpush1.bf16.msra.mxu0 0
      %1395 = vmatprep.subr.bf16.mxu0 0
      %1396 = vmatpush1.bf16.msra.mxu0 0
      %1397 = vmatprep.subr.bf16.mxu0 0
      %1398 = vmatpush1.bf16.msra.mxu0 0
      %1399 = vmatprep.subr.bf16.mxu0 0
      %1400 = vmatpush1.bf16.msra.mxu0 0
      %1401 = vmatprep.subr.bf16.mxu0 0
      %1402 = vmatpush1.bf16.msra.mxu0 0
      %1403 = vmatprep.subr.bf16.mxu0 0
      %1404 = vmatpush1.bf16.msra.mxu0 0
      %1405 = vmatprep.subr.bf16.mxu0 0
      %1406 = vmatpush1.bf16.msra.mxu0 0
      %1407 = vmatprep.subr.bf16.mxu0 0
      %1408 = vmatpush1.bf16.msra.mxu0 0
      %1409 = vmatprep.mubr.bf16.mxu0 0
      %1410 = vmatmul.mubr.bf16.gmra.mrb[0].mxu0 %v1184
      %v1411 = vpop.f32.mrb[0].mxu0
      %v1412 = vadd.f32 0.0, %v1411
      %v1413 = vpop.f32.mrb[0].mxu0
      %v1414 = vadd.f32 0.0, %v1413
      %v1415 = vpop.f32.mrb[0].mxu0
      %v1416 = vadd.f32 0.0, %v1415
      %v1417 = vpop.f32.mrb[0].mxu0
      %v1418 = vadd.f32 0.0, %v1417
      %1419 = vdwg.mxu0
      %1420 = vmatprep.subr.bf16.mxu0 %v1316
      %1421 = vmatpush1.bf16.msra.mxu0 %v1315
      %1422 = vmatprep.subr.bf16.mxu0 %v1320
      %1423 = vmatpush1.bf16.msra.mxu0 %v1319
      %1424 = vmatprep.subr.bf16.mxu0 %v1324
      %1425 = vmatpush1.bf16.msra.mxu0 %v1323
      %1426 = vmatprep.subr.bf16.mxu0 %v1328
      %1427 = vmatpush1.bf16.msra.mxu0 %v1327
      %1428 = vmatprep.subr.bf16.mxu0 %v1332
      %1429 = vmatpush1.bf16.msra.mxu0 %v1331
      %1430 = vmatprep.subr.bf16.mxu0 %v1336
      %1431 = vmatpush1.bf16.msra.mxu0 %v1335
      %1432 = vmatprep.subr.bf16.mxu0 %v1340
      %1433 = vmatpush1.bf16.msra.mxu0 %v1339
      %1434 = vmatprep.subr.bf16.mxu0 %v1344
      %1435 = vmatpush1.bf16.msra.mxu0 %v1343
      %1436 = vmatprep.subr.bf16.mxu0 0
      %1437 = vmatpush1.bf16.msra.mxu0 0
      %1438 = vmatprep.subr.bf16.mxu0 0
      %1439 = vmatpush1.bf16.msra.mxu0 0
      %1440 = vmatprep.subr.bf16.mxu0 0
      %1441 = vmatpush1.bf16.msra.mxu0 0
      %1442 = vmatprep.subr.bf16.mxu0 0
      %1443 = vmatpush1.bf16.msra.mxu0 0
      %1444 = vmatprep.subr.bf16.mxu0 0
      %1445 = vmatpush1.bf16.msra.mxu0 0
      %1446 = vmatprep.subr.bf16.mxu0 0
      %1447 = vmatpush1.bf16.msra.mxu0 0
      %1448 = vmatprep.subr.bf16.mxu0 0
      %1449 = vmatpush1.bf16.msra.mxu0 0
      %1450 = vmatprep.subr.bf16.mxu0 0
      %1451 = vmatpush1.bf16.msra.mxu0 0
      %1452 = vmatprep.mubr.bf16.mxu0 0
      %1453 = vmatmul.mubr.bf16.gmra.mrb[0].mxu0 %v1184
      %v1454 = vpop.f32.mrb[0].mxu0
      %v1455 = vadd.f32 0.0, %v1454
      %v1456 = vpop.f32.mrb[0].mxu0
      %v1457 = vadd.f32 0.0, %v1456
      %v1458 = vpop.f32.mrb[0].mxu0
      %v1459 = vadd.f32 0.0, %v1458
      %v1460 = vpop.f32.mrb[0].mxu0
      %v1461 = vadd.f32 0.0, %v1460
      %1462 = vdwg.mxu0
      %v1463 = vadd.f32 %v1176, %v1412
      %v1464 = vadd.f32 %v1177, %v1414
      %v1465 = vadd.f32 %v1178, %v1455
      %v1466 = vadd.f32 %v1179, %v1457
      %v1467 = vadd.f32 %v1180, %v1416
      %v1468 = vadd.f32 %v1181, %v1418
      %v1469 = vadd.f32 %v1182, %v1459
      %v1470 = vadd.f32 %v1183, %v1461
      %v1471 = vxor.u32 %v1162, 2147483648
      %v1472 = vxor.u32 %v1163, 2147483648
      %v1473 = vxor.u32 %v1164, 2147483648
      %v1474 = vxor.u32 %v1166, 2147483648
      %v1475 = vxor.u32 %v1167, 2147483648
      %v1476 = vxor.u32 %v1168, 2147483648
      %v1477 = vmul.f32 %v1471, 1.442695
      %v1478 = vpow.pop %v1477
      %v1479 = vmul.f32 %v1472, 1.442695
      %v1480 = vpow.pop %v1479
      %v1481 = vmul.f32 %v1473, 1.442695
      %v1482 = vpow.pop %v1481
      %v1483 = vmul.f32 %v1474, 1.442695
      %v1484 = vpow.pop %v1483
      %v1485 = vmul.f32 %v1475, 1.442695
      %v1486 = vpow.pop %v1485
      %v1487 = vmul.f32 %v1476, 1.442695
      %v1488 = vpow.pop %v1487
      %v1489 = vadd.f32 %v1478, 1.0
      %v1490 = vadd.f32 %v1480, 1.0
      %v1491 = vadd.f32 %v1482, 1.0
      %v1492 = vadd.f32 %v1484, 1.0
      %v1493 = vadd.f32 %v1486, 1.0
      %v1494 = vadd.f32 %v1488, 1.0
      %v1495 = vrcp.pop %v1489
      %v1496 = vmul.f32 1.0, %v1495
      %v1497 = vrcp.pop %v1490
      %v1498 = vmul.f32 1.0, %v1497
      %v1499 = vrcp.pop %v1491
      %v1500 = vmul.f32 1.0, %v1499
      %v1501 = vrcp.pop %v1492
      %v1502 = vmul.f32 1.0, %v1501
      %v1503 = vrcp.pop %v1493
      %v1504 = vmul.f32 1.0, %v1503
      %v1505 = vrcp.pop %v1494
      %v1506 = vmul.f32 1.0, %v1505
      %v1507 = vtanh.pop %v1165
      %v1508 = vtanh.pop %v1169
      %v1509 = vmul.f32 %v1498, %v862
      %v1510 = vmul.f32 %v1504, %v863
      %v1511 = vmul.f32 %v1496, %v1507
      %v1512 = vmul.f32 %v1502, %v1508
      %v1513 = vadd.f32 %v1509, %v1511
      %v1514 = vadd.f32 %v1510, %v1512
      %v1515 = vtanh.pop %v1513
      %v1516 = vtanh.pop %v1514
      %v1517 = vmul.f32 %v1500, %v1515
      %v1518 = vmul.f32 %v1506, %v1516
      %v1519 = vsel %vm854, 1, 0
      %v1520 = vsel %vm855, 1, 0
      %1521 = vset.pattern.permute.xlu0 0
      %1522 = vperm.xlu0 %1521, %v1519
      %v1523 = vpop.permute.xlu0 %1522
      %1524 = vset.pattern.permute.xlu0 0
      %1525 = vperm.xlu0 %1524, %v1520
      %v1526 = vpop.permute.xlu0 %1525
      %vm1527 = vcmp.eq.s32.totalorder %v1523, 1
      %vm1528 = vcmp.eq.s32.totalorder %v1526, 1
      %v1529 = vsel %vm1527, %v1513, %v862
      %v1530 = vsel %vm1528, %v1514, %v863
      %v1531 = vsel %vm1527, %v1517, %v860
      %v1532 = vsel %vm1528, %v1518, %v861
      %v1533 = vxor.u32 %v1463, 2147483648
      %v1534 = vxor.u32 %v1464, 2147483648
      %v1535 = vxor.u32 %v1465, 2147483648
      %v1536 = vxor.u32 %v1467, 2147483648
      %v1537 = vxor.u32 %v1468, 2147483648
      %v1538 = vxor.u32 %v1469, 2147483648
      %v1539 = vmul.f32 %v1533, 1.442695
      %v1540 = vpow.pop %v1539
      %v1541 = vmul.f32 %v1534, 1.442695
      %v1542 = vpow.pop %v1541
      %v1543 = vmul.f32 %v1535, 1.442695
      %v1544 = vpow.pop %v1543
      %v1545 = vmul.f32 %v1536, 1.442695
      %v1546 = vpow.pop %v1545
      %v1547 = vmul.f32 %v1537, 1.442695
      %v1548 = vpow.pop %v1547
      %v1549 = vmul.f32 %v1538, 1.442695
      %v1550 = vpow.pop %v1549
      %v1551 = vadd.f32 %v1540, 1.0
      %v1552 = vadd.f32 %v1542, 1.0
      %v1553 = vadd.f32 %v1544, 1.0
      %v1554 = vadd.f32 %v1546, 1.0
      %v1555 = vadd.f32 %v1548, 1.0
      %v1556 = vadd.f32 %v1550, 1.0
      %v1557 = vrcp.pop %v1551
      %v1558 = vmul.f32 1.0, %v1557
      %v1559 = vrcp.pop %v1552
      %v1560 = vmul.f32 1.0, %v1559
      %v1561 = vrcp.pop %v1553
      %v1562 = vmul.f32 1.0, %v1561
      %v1563 = vrcp.pop %v1554
      %v1564 = vmul.f32 1.0, %v1563
      %v1565 = vrcp.pop %v1555
      %v1566 = vmul.f32 1.0, %v1565
      %v1567 = vrcp.pop %v1556
      %v1568 = vmul.f32 1.0, %v1567
      %v1569 = vtanh.pop %v1466
      %v1570 = vtanh.pop %v1470
      %v1571 = vmul.f32 %v1560, %v866
      %v1572 = vmul.f32 %v1566, %v867
      %v1573 = vmul.f32 %v1558, %v1569
      %v1574 = vmul.f32 %v1564, %v1570
      %v1575 = vadd.f32 %v1571, %v1573
      %v1576 = vadd.f32 %v1572, %v1574
      %v1577 = vtanh.pop %v1575
      %v1578 = vtanh.pop %v1576
      %v1579 = vmul.f32 %v1562, %v1577
      %v1580 = vmul.f32 %v1568, %v1578
      %v1581 = vsel %vm858, 1, 0
      %v1582 = vsel %vm859, 1, 0
      %1583 = vset.pattern.permute.xlu0 0
      %1584 = vperm.xlu0 %1583, %v1581
      %v1585 = vpop.permute.xlu0 %1584
      %1586 = vset.pattern.permute.xlu0 0
      %1587 = vperm.xlu0 %1586, %v1582
      %v1588 = vpop.permute.xlu0 %1587
      %vm1589 = vcmp.eq.s32.totalorder %v1585, 1
      %vm1590 = vcmp.eq.s32.totalorder %v1588, 1
      %v1591 = vsel %vm1589, %v1575, %v866
      %v1592 = vsel %vm1590, %v1576, %v867
      %v1593 = vsel %vm1589, %v1579, %v864
      %v1594 = vsel %vm1590, %v1580, %v865
      %1595 = vst [vmem:[#allocation2] sm:$0xff] %v1531
      %1596 = vst [vmem:[#allocation2 + $0x8] sm:$0xff] %v1532
      %1597 = vst [vmem:[#allocation3] sm:$0xff] %v1529
      %1598 = vst [vmem:[#allocation3 + $0x8] sm:$0xff] %v1530
      %1599 = vst [vmem:[#allocation4] sm:$0xff] %v1593
      %1600 = vst [vmem:[#allocation4 + $0x8] sm:$0xff] %v1594
      %1601 = vst [vmem:[#allocation5] sm:$0xff] %v1591
      %1602 = vst [vmem:[#allocation5 + $0x8] sm:$0xff] %v1592
      %v1603 = vsel %vm1527, %v1517, 0.0
      %v1604 = vsel %vm1528, %v1518, 0.0
      %s1605 = smul.u32 %s850, 16
      %s1606 = scalar_lea.vmem [#allocation12], %s1605
      %1607 = vst [vmem:[%s1606] sm:$0xff] %v1603
      %1608 = vst [vmem:[%s1606 + $0x8] sm:$0xff] %v1604
      %v1609 = vsel %vm1589, %v1579, 0.0
      %v1610 = vsel %vm1590, %v1580, 0.0
      %s1611 = scalar_lea.vmem [#allocation13], %s1605
      %1612 = vst [vmem:[%s1611] sm:$0xff] %v1609
      %1613 = vst [vmem:[%s1611 + $0x8] sm:$0xff] %v1610
    $region38: #{tpu_custom_call.1} parent=1 // loop_footer
      %s84 = sadd.s32 1, %s80
    $region39: #{tpu_custom_call.1} parent=1 // loop_footer_branch
      %79 = sbr.rel target = $region35
    $region40: #{tpu_custom_call.1} parent=1 // loop_exit
      _
    // Predicated region
    $region41: #{tpu_custom_call.1} parent=1 // pred_check
      _
    $region42: #{tpu_custom_call.1} parent=1 // pred_check_branch
      %1615 = sbr.rel (0) target = $region44
    $region43: #{tpu_custom_call.1} parent=1 // pred_region
      %s1617 = ssub.s32 2048, 2048
      %1618 = vsyncadd [#allocation8], %s1617
      %s1619 = sshll.u32 [#allocation12], 4
      %s1620 = int_to_ptr.vmem [resolvable:$true] %s1619
      %1625 = dma.vmem_to_hbm [thread:$0]  %s1620, 2048, %s4, [#allocation8], 128, 128, 8
    $region44: #{tpu_custom_call.1} parent=1 // pred_fallthru
      _
    // Predicated region
    $region45: #{tpu_custom_call.1} parent=1 // pred_check
      _
    $region46: #{tpu_custom_call.1} parent=1 // pred_check_branch
      %1627 = sbr.rel (0) target = $region48
    $region47: #{tpu_custom_call.1} parent=1 // pred_region
      %s1629 = ssub.s32 2048, 2048
      %1630 = vsyncadd [#allocation14], %s1629
      %s1631 = sshll.u32 [#allocation13], 4
      %s1632 = int_to_ptr.vmem [resolvable:$true] %s1631
      %1637 = dma.vmem_to_hbm [thread:$0]  %s1632, 2048, %s5, [#allocation14], 128, 128, 8
    $region48: #{tpu_custom_call.1} parent=1 // pred_fallthru
      _
    // Predicated region
    $region49: #{tpu_custom_call.1} parent=1 // pred_check
      _
    $region50: #{tpu_custom_call.1} parent=1 // pred_check_branch
      %1639 = sbr.rel (0) target = $region52
    $region51: #{tpu_custom_call.1} parent=1 // pred_region
      %1640 = dma.done [#allocation8], 2048
    $region52: #{tpu_custom_call.1} parent=1 // pred_fallthru
      _
    // Predicated region
    $region53: #{tpu_custom_call.1} parent=1 // pred_check
      _
    $region54: #{tpu_custom_call.1} parent=1 // pred_check_branch
      %1642 = sbr.rel (0) target = $region56
    $region55: #{tpu_custom_call.1} parent=1 // pred_region
      %1643 = dma.done [#allocation14], 2048
    $region56: #{tpu_custom_call.1} parent=1 // pred_fallthru
      _
    %1644 = vsyncpa [#allocation7], 1
    %1645 = vsyncpa [#allocation10], 1
    %1646 = vsyncpa [#allocation8], 1
    %1647 = vsyncpa [#allocation14], 1

</llo_original>
